<compile_context>
chip_gen: v7x
topology: tpu7x:2x2x1
jax: 0.10.0
libtpu: 0.0.40
codegen_flags: <defaults>
</compile_context>

<pallas_src>
import functools

import jax
import jax.numpy as jnp
from jax.experimental import pallas as pl
from jax.experimental.pallas import tpu as pltpu


def _round_up(x, m):
    return ((x + m - 1) // m) * m


def _lstm_recurrence_kernel(gx_ref, w_hh_hbm_ref, h_last_ref,
                            h_ref, c_ref, w_hh_vmem,
                            *, hidden_pad, t_chunk, seq_len):
    """One grid step = one (batch_tile, t_chunk) block of the recurrence.

    gx_ref      : (t_chunk, batch_tile, 4*Hp)  precomputed x@W_ih^T + b (time-major)
    w_hh_hbm_ref: (Hp, 4*Hp) recurrent weight, left in HBM (pl.ANY)
    h_last_ref  : (batch_tile, Hp) output — final hidden state
    h_ref, c_ref: (batch_tile, Hp) f32 state scratch (persists across time chunks)
    w_hh_vmem   : (Hp, 4*Hp) VMEM scratch holding a single resident copy of W_hh^T
    """
    c_idx = pl.program_id(1)  # time-chunk index (axis 0 is the parallel batch axis)

    @pl.when(c_idx == 0)
    def _():
        h_ref[...] = jnp.zeros_like(h_ref)
        c_ref[...] = jnp.zeros_like(c_ref)
        # Constant-index weight: load once per batch tile, single-buffered in VMEM.
        pltpu.sync_copy(w_hh_hbm_ref, w_hh_vmem)

    Hp = hidden_pad
    w_hh = w_hh_vmem[...]
    # Number of real (non-padded) timesteps in this chunk.
    remaining = seq_len - c_idx * t_chunk

    def step(t, carry):
        h, c = carry
        gates = (gx_ref[t].astype(jnp.float32)
                 + jnp.dot(h.astype(w_hh.dtype), w_hh,
                           preferred_element_type=jnp.float32))
        # Lane-aligned full-vreg gate slabs (Hp is a multiple of 128).
        i_g = jax.nn.sigmoid(gates[:, 0 * Hp:1 * Hp])
        f_g = jax.nn.sigmoid(gates[:, 1 * Hp:2 * Hp])
        g_g = jnp.tanh(gates[:, 2 * Hp:3 * Hp])
        o_g = jax.nn.sigmoid(gates[:, 3 * Hp:4 * Hp])
        c_new = f_g * c + i_g * g_g
        h_new = o_g * jnp.tanh(c_new)
        # Mask out padded timesteps in the last chunk (static trip count).
        valid = t < remaining
        return jnp.where(valid, h_new, h), jnp.where(valid, c_new, c)

    h, c = jax.lax.fori_loop(0, t_chunk, step, (h_ref[...], c_ref[...]),
                             unroll=(t_chunk <= 16))
    h_ref[...] = h
    c_ref[...] = c

    @pl.when(c_idx == pl.num_programs(1) - 1)
    def _():
        h_last_ref[...] = h


def lstm_model_forward(x, params, *, t_chunk=None, batch_tile=None,
                       matmul_dtype=jnp.float32):
    """x: (B, S, I) float32, batch_first — same convention as the PyTorch module.

    matmul_dtype=jnp.bfloat16 switches ONLY the in-kernel h @ W_hh^T matmul (and the
    gx/W_hh VMEM residency) to bf16 for v6e/v7x MXU throughput; state and all
    elementwise gate math stay f32.  The hoisted XLA-side input projection is always
    an f32 GEMM so no unsupported mixed-precision dot is emitted outside the kernel.
    """
    B, S, I = x.shape
    H = params["w_hh"].shape[1]          # w_hh: (4H, H)
    if S == 0:
        raise ValueError("sequence length must be >= 1")

    f32 = jnp.float32
    H_pad = _round_up(H, 128)            # lane-aligned hidden / gate slabs
    if batch_tile is None:
        batch_tile = _round_up(B, 8)     # sublane-aligned batch
    batch_tile = _round_up(batch_tile, 8)
    B_pad = _round_up(B, batch_tile)
    if t_chunk is None:
        t_chunk = min(S, 32)
    S_pad = _round_up(S, t_chunk)
    n_b = B_pad // batch_tile
    n_c = S_pad // t_chunk

    # --- one-time weight prep: gate-padded, pre-transposed ---------------------
    w_ih = params["w_ih"].astype(f32)                       # (4H, I)
    w_hh = params["w_hh"].astype(f32)                       # (4H, H)
    b = (params["b_ih"] + params["b_hh"]).astype(f32)       # (4H,)
    ph = H_pad - H
    w_ih_g = jnp.pad(w_ih.reshape(4, H, I), ((0, 0), (0, ph), (0, 0)))
    w_hh_g = jnp.pad(w_hh.reshape(4, H, H), ((0, 0), (0, ph), (0, ph)))
    b_g = jnp.pad(b.reshape(4, H), ((0, 0), (0, ph))).reshape(1, 1, 4 * H_pad)
    w_ih_t = w_ih_g.reshape(4 * H_pad, I).T                             # (I, 4Hp) f32
    w_hh_t = w_hh_g.reshape(4 * H_pad, H_pad).T.astype(matmul_dtype)    # (Hp, 4Hp)

    # --- hoisted input projection: one big MXU-friendly f32 GEMM, time-major output ---
    gx = jnp.einsum("bsi,ig->sbg", x.astype(f32), w_ih_t,
                    preferred_element_type=jnp.float32) + b_g           # (S, B, 4Hp) f32
    gx = gx.astype(matmul_dtype)
    gx = jnp.pad(gx, ((0, S_pad - S), (0, B_pad - B), (0, 0)))          # (S_pad, B_pad, 4Hp)

    kernel = functools.partial(_lstm_recurrence_kernel,
                               hidden_pad=H_pad, t_chunk=t_chunk, seq_len=S)

    itemsize = jnp.dtype(matmul_dtype).itemsize
    vmem_bytes = (2 * t_chunk * batch_tile * 4 * H_pad * itemsize   # gx (double-buffered)
                  + H_pad * 4 * H_pad * itemsize                    # W_hh^T (single copy)
                  + 3 * batch_tile * H_pad * 4)                     # h, c, out
    vmem_limit = int(min(max(2 * vmem_bytes, 32 * 1024 * 1024), 56 * 1024 * 1024))

    h_last = pl.pallas_call(
        kernel,
        out_shape=jax.ShapeDtypeStruct((B_pad, H_pad), jnp.float32),
        grid_spec=pltpu.PrefetchScalarGridSpec(
            num_scalar_prefetch=0,
            grid=(n_b, n_c),                                   # (batch tiles, time chunks)
            in_specs=[
                # Precomputed input-gate contributions, chunked along time.
                pl.BlockSpec((t_chunk, batch_tile, 4 * H_pad),
                             lambda b, c: (c, b, 0)),
                # Recurrent weight stays in HBM; DMA'd once into VMEM scratch.
                pl.BlockSpec(memory_space=pl.ANY),
            ],
            out_specs=pl.BlockSpec((batch_tile, H_pad), lambda b, c: (b, 0)),
            scratch_shapes=[
                pltpu.VMEM((batch_tile, H_pad), jnp.float32),     # h state
                pltpu.VMEM((batch_tile, H_pad), jnp.float32),     # c state
                pltpu.VMEM((H_pad, 4 * H_pad), matmul_dtype),     # resident W_hh^T
            ],
        ),
        compiler_params=pltpu.CompilerParams(
            # Batch tiles are independent (megacore on v7x); time is serial.
            dimension_semantics=("parallel", "arbitrary"),
            vmem_limit_bytes=vmem_limit,
        ),
    )(gx, w_hh_t)

    # --- final FC outside the recurrence (used only once, O is tiny) ------------
    h_real = h_last[:B, :H]
    return h_real @ params["w_fc"].astype(f32).T + params["b_fc"].astype(f32)


def _reference_forward(x, params):
    """Pure-JAX reference replicating nn.LSTM(batch_first=True) + nn.Linear."""
    B, S, I = x.shape
    H = params["w_hh"].shape[1]
    w_ih, w_hh = params["w_ih"], params["w_hh"]
    b = params["b_ih"] + params["b_hh"]

    def step(carry, x_t):
        h, c = carry
        gates = x_t @ w_ih.T + h @ w_hh.T + b
        i = jax.nn.sigmoid(gates[:, 0 * H:1 * H])
        f = jax.nn.sigmoid(gates[:, 1 * H:2 * H])
        g = jnp.tanh(gates[:, 2 * H:3 * H])
        o = jax.nn.sigmoid(gates[:, 3 * H:4 * H])
        c = f * c + i * g
        h = o * jnp.tanh(c)
        return (h, c), h

    h0 = jnp.zeros((B, H), jnp.float32)
    c0 = jnp.zeros((B, H), jnp.float32)
    (h_last, _), _ = jax.lax.scan(step, (h0, c0), jnp.transpose(x, (1, 0, 2)))
    return h_last @ params["w_fc"].T + params["b_fc"]


def _init_params(key, input_size, hidden_size, output_size):
    """Deterministic init matching PyTorch parameter shapes (uniform +-1/sqrt(H))."""
    ks = jax.random.split(key, 6)
    bound = 1.0 / jnp.sqrt(jnp.float32(hidden_size))
    u = lambda k, shape: jax.random.uniform(k, shape, jnp.float32, -bound, bound)
    return {
        "w_ih": u(ks[0], (4 * hidden_size, input_size)),
        "w_hh": u(ks[1], (4 * hidden_size, hidden_size)),
        "b_ih": u(ks[2], (4 * hidden_size,)),
        "b_hh": u(ks[3], (4 * hidden_size,)),
        "w_fc": u(ks[4], (output_size, hidden_size)),
        "b_fc": u(ks[5], (output_size,)),
    }


if __name__ == "__main__":
    key = jax.random.PRNGKey(0)
    k_x, k_p, k_x2 = jax.random.split(key, 3)

    # Config A: small shapes consistent with the module, f32.
    B, S, I, H, O = 2, 8, 16, 32, 4
    x = jax.random.normal(k_x, (B, S, I), jnp.float32)
    params = _init_params(k_p, I, H, O)

    out = jax.block_until_ready(lstm_model_forward(x, params))
    ref = _reference_forward(x, params)
    assert out.shape == (B, O)
    assert jnp.allclose(out, ref, atol=1e-4, rtol=1e-4), "f32 mismatch vs reference"

    # Config B: exercises multiple batch tiles + multiple time chunks with remainder.
    B2, S2 = 16, 10
    x2 = jax.random.normal(k_x2, (B2, S2, I), jnp.float32)
    out2 = jax.block_until_ready(
        lstm_model_forward(x2, params, t_chunk=4, batch_tile=8))
    ref2 = _reference_forward(x2, params)
    assert out2.shape == (B2, O)
    assert jnp.allclose(out2, ref2, atol=1e-4, rtol=1e-4), "chunked mismatch vs reference"

    # NOTE: the bf16 in-kernel matmul path (matmul_dtype=jnp.bfloat16) is available for
    # real v6e/v7x hardware but is not exercised here so the script also runs cleanly
    # under CPU-backed interpret execution (no BF16xBF16=F32 dot support there).

    print("KERNEL_OK")
</pallas_src>

<mosaic_0001>
module attributes {stable_mosaic.version = 11 : i64} {
  func.func @_lstm_recurrence_kernel(%arg0: i32, %arg1: i32, %arg2: memref<8x8x512xf32, #tpu.memory_space<vmem>>, %arg3: memref<128x512xf32, #tpu.memory_space<any>>, %arg4: memref<8x128xf32, #tpu.memory_space<vmem>>, %arg5: memref<8x128xf32, #tpu.memory_space<vmem>>, %arg6: memref<8x128xf32, #tpu.memory_space<vmem>>, %arg7: memref<128x512xf32, #tpu.memory_space<vmem>>) attributes {dimension_semantics = [#tpu.dimension_semantics<parallel>, #tpu.dimension_semantics<arbitrary>], iteration_bounds = array<i64: 1, 1>, scalar_prefetch = 0 : i64, scratch_operands = 3 : i64, tpu.core_type = #tpu.core_type<tc>, window_params = [{transform_indices = @transform_0, window_bounds = array<i64: 8, 8, 512>}, {}, {transform_indices = @transform_2, window_bounds = array<i64: 8, 128>}]} {
    %c0_i32 = arith.constant 0 : i32
    %0 = arith.cmpi eq, %arg1, %c0_i32 : i32
    %1 = arith.extui %0 : i1 to i32
    %c0_i32_0 = arith.constant 0 : i32
    %2 = arith.cmpi ne, %1, %c0_i32_0 : i32
    scf.if %2 {
      %cst_62 = arith.constant 0.000000e+00 : f32
      %277 = vector.broadcast %cst_62 : f32 to vector<8x128xf32>
      %c0_63 = arith.constant 0 : index
      %c0_64 = arith.constant 0 : index
      %278 = vector.load %arg5[%c0_63, %c0_64] : memref<8x128xf32, #tpu.memory_space<vmem>>, vector<8x128xf32>
      tpu.vector_store %arg5[%c0_63, %c0_64], %277 {strides = array<i32>} : memref<8x128xf32, #tpu.memory_space<vmem>>, vector<8x128xf32>,
      %cst_65 = arith.constant 0.000000e+00 : f32
      %279 = vector.broadcast %cst_65 : f32 to vector<8x128xf32>
      %c0_66 = arith.constant 0 : index
      %c0_67 = arith.constant 0 : index
      %280 = vector.load %arg6[%c0_66, %c0_67] : memref<8x128xf32, #tpu.memory_space<vmem>>, vector<8x128xf32>
      tpu.vector_store %arg6[%c0_66, %c0_67], %279 {strides = array<i32>} : memref<8x128xf32, #tpu.memory_space<vmem>>, vector<8x128xf32>,
      "tpu.region"() ({
        %281 = tpu.sem_alloc : memref<!tpu.dma_semaphore, #tpu.memory_space<semaphore_mem>>
        tpu.enqueue_dma source(%arg3 : memref<128x512xf32, #tpu.memory_space<any>>) target(%arg7 : memref<128x512xf32, #tpu.memory_space<vmem>>) target_semaphore(%281 : memref<!tpu.dma_semaphore, #tpu.memory_space<semaphore_mem>>)
        tpu.wait_dma2 semaphore(%281 : memref<!tpu.dma_semaphore, #tpu.memory_space<semaphore_mem>>) src(%arg3 : memref<128x512xf32, #tpu.memory_space<any>>) dst(%arg7 : memref<128x512xf32, #tpu.memory_space<vmem>>)
        tpu.yield
      }) : () -> ()
    } else {
    }
    %c0 = arith.constant 0 : index
    %c0_1 = arith.constant 0 : index
    %3 = vector.load %arg7[%c0, %c0_1] : memref<128x512xf32, #tpu.memory_space<vmem>>, vector<128x512xf32>
    %c8_i32 = arith.constant 8 : i32
    %4 = arith.muli %arg1, %c8_i32 : i32
    %c8_i32_2 = arith.constant 8 : i32
    %5 = arith.subi %c8_i32_2, %4 : i32
    %c0_3 = arith.constant 0 : index
    %c0_4 = arith.constant 0 : index
    %6 = vector.load %arg5[%c0_3, %c0_4] : memref<8x128xf32, #tpu.memory_space<vmem>>, vector<8x128xf32>
    %c0_5 = arith.constant 0 : index
    %c0_6 = arith.constant 0 : index
    %7 = vector.load %arg6[%c0_5, %c0_6] : memref<8x128xf32, #tpu.memory_space<vmem>>, vector<8x128xf32>
    %c0_i32_7 = arith.constant 0 : i32
    %8 = arith.index_cast %c0_i32_7 : i32 to index
    %c0_8 = arith.constant 0 : index
    %c0_9 = arith.constant 0 : index
    %9 = vector.load %arg2[%8, %c0_8, %c0_9] : memref<8x8x512xf32, #tpu.memory_space<vmem>>, vector<1x8x512xf32>
    %10 = vector.shape_cast %9 : vector<1x8x512xf32> to vector<8x512xf32>
    %cst = arith.constant dense<0.000000e+00> : vector<8x512xf32>
    %11 = tpu.matmul %6, %3, %cst {dimension_numbers = #tpu.dot_dimension_numbers<[1], [0], [0], [1], [0, 0, 1, 1], [], []>} : vector<8x128xf32>, vector<128x512xf32>, vector<8x512xf32> -> vector<8x512xf32>
    %12 = arith.addf %10, %11 : vector<8x512xf32>
    %13 = vector.extract_strided_slice %12 {offsets = [0, 0], sizes = [8, 128], strides = [1, 1]} : vector<8x512xf32> to vector<8x128xf32>
    %14 = arith.negf %13 : vector<8x128xf32>
    %15 = math.exp %14 : vector<8x128xf32>
    %cst_10 = arith.constant 1.000000e+00 : f32
    %16 = vector.broadcast %cst_10 : f32 to vector<8x128xf32>
    %17 = arith.addf %16, %15 : vector<8x128xf32>
    %18 = arith.divf %16, %17 : vector<8x128xf32>
    %19 = vector.extract_strided_slice %12 {offsets = [0, 128], sizes = [8, 128], strides = [1, 1]} : vector<8x512xf32> to vector<8x128xf32>
    %20 = arith.negf %19 : vector<8x128xf32>
    %21 = math.exp %20 : vector<8x128xf32>
    %cst_11 = arith.constant 1.000000e+00 : f32
    %22 = vector.broadcast %cst_11 : f32 to vector<8x128xf32>
    %23 = arith.addf %22, %21 : vector<8x128xf32>
    %24 = arith.divf %22, %23 : vector<8x128xf32>
    %25 = vector.extract_strided_slice %12 {offsets = [0, 256], sizes = [8, 128], strides = [1, 1]} : vector<8x512xf32> to vector<8x128xf32>
    %26 = math.tanh %25 : vector<8x128xf32>
    %27 = vector.extract_strided_slice %12 {offsets = [0, 384], sizes = [8, 128], strides = [1, 1]} : vector<8x512xf32> to vector<8x128xf32>
    %28 = arith.negf %27 : vector<8x128xf32>
    %29 = math.exp %28 : vector<8x128xf32>
    %cst_12 = arith.constant 1.000000e+00 : f32
    %30 = vector.broadcast %cst_12 : f32 to vector<8x128xf32>
    %31 = arith.addf %30, %29 : vector<8x128xf32>
    %32 = arith.divf %30, %31 : vector<8x128xf32>
    %33 = arith.mulf %24, %7 : vector<8x128xf32>
    %34 = arith.mulf %18, %26 : vector<8x128xf32>
    %35 = arith.addf %33, %34 : vector<8x128xf32>
    %36 = math.tanh %35 : vector<8x128xf32>
    %37 = arith.mulf %32, %36 : vector<8x128xf32>
    %38 = arith.cmpi slt, %c0_i32_7, %5 : i32
    %39 = arith.select %38, %37, %6 : vector<8x128xf32>
    %40 = arith.select %38, %35, %7 : vector<8x128xf32>
    %c1_i32 = arith.constant 1 : i32
    %41 = arith.index_cast %c1_i32 : i32 to index
    %c0_13 = arith.constant 0 : index
    %c0_14 = arith.constant 0 : index
    %42 = vector.load %arg2[%41, %c0_13, %c0_14] : memref<8x8x512xf32, #tpu.memory_space<vmem>>, vector<1x8x512xf32>
    %43 = vector.shape_cast %42 : vector<1x8x512xf32> to vector<8x512xf32>
    %cst_15 = arith.constant dense<0.000000e+00> : vector<8x512xf32>
    %44 = tpu.matmul %39, %3, %cst_15 {dimension_numbers = #tpu.dot_dimension_numbers<[1], [0], [0], [1], [0, 0, 1, 1], [], []>} : vector<8x128xf32>, vector<128x512xf32>, vector<8x512xf32> -> vector<8x512xf32>
    %45 = arith.addf %43, %44 : vector<8x512xf32>
    %46 = vector.extract_strided_slice %45 {offsets = [0, 0], sizes = [8, 128], strides = [1, 1]} : vector<8x512xf32> to vector<8x128xf32>
    %47 = arith.negf %46 : vector<8x128xf32>
    %48 = math.exp %47 : vector<8x128xf32>
    %cst_16 = arith.constant 1.000000e+00 : f32
    %49 = vector.broadcast %cst_16 : f32 to vector<8x128xf32>
    %50 = arith.addf %49, %48 : vector<8x128xf32>
    %51 = arith.divf %49, %50 : vector<8x128xf32>
    %52 = vector.extract_strided_slice %45 {offsets = [0, 128], sizes = [8, 128], strides = [1, 1]} : vector<8x512xf32> to vector<8x128xf32>
    %53 = arith.negf %52 : vector<8x128xf32>
    %54 = math.exp %53 : vector<8x128xf32>
    %cst_17 = arith.constant 1.000000e+00 : f32
    %55 = vector.broadcast %cst_17 : f32 to vector<8x128xf32>
    %56 = arith.addf %55, %54 : vector<8x128xf32>
    %57 = arith.divf %55, %56 : vector<8x128xf32>
    %58 = vector.extract_strided_slice %45 {offsets = [0, 256], sizes = [8, 128], strides = [1, 1]} : vector<8x512xf32> to vector<8x128xf32>
    %59 = math.tanh %58 : vector<8x128xf32>
    %60 = vector.extract_strided_slice %45 {offsets = [0, 384], sizes = [8, 128], strides = [1, 1]} : vector<8x512xf32> to vector<8x128xf32>
    %61 = arith.negf %60 : vector<8x128xf32>
    %62 = math.exp %61 : vector<8x128xf32>
    %cst_18 = arith.constant 1.000000e+00 : f32
    %63 = vector.broadcast %cst_18 : f32 to vector<8x128xf32>
    %64 = arith.addf %63, %62 : vector<8x128xf32>
    %65 = arith.divf %63, %64 : vector<8x128xf32>
    %66 = arith.mulf %57, %40 : vector<8x128xf32>
    %67 = arith.mulf %51, %59 : vector<8x128xf32>
    %68 = arith.addf %66, %67 : vector<8x128xf32>
    %69 = math.tanh %68 : vector<8x128xf32>
    %70 = arith.mulf %65, %69 : vector<8x128xf32>
    %71 = arith.cmpi slt, %c1_i32, %5 : i32
    %72 = arith.select %71, %70, %39 : vector<8x128xf32>
    %73 = arith.select %71, %68, %40 : vector<8x128xf32>
    %c2_i32 = arith.constant 2 : i32
    %74 = arith.index_cast %c2_i32 : i32 to index
    %c0_19 = arith.constant 0 : index
    %c0_20 = arith.constant 0 : index
    %75 = vector.load %arg2[%74, %c0_19, %c0_20] : memref<8x8x512xf32, #tpu.memory_space<vmem>>, vector<1x8x512xf32>
    %76 = vector.shape_cast %75 : vector<1x8x512xf32> to vector<8x512xf32>
    %cst_21 = arith.constant dense<0.000000e+00> : vector<8x512xf32>
    %77 = tpu.matmul %72, %3, %cst_21 {dimension_numbers = #tpu.dot_dimension_numbers<[1], [0], [0], [1], [0, 0, 1, 1], [], []>} : vector<8x128xf32>, vector<128x512xf32>, vector<8x512xf32> -> vector<8x512xf32>
    %78 = arith.addf %76, %77 : vector<8x512xf32>
    %79 = vector.extract_strided_slice %78 {offsets = [0, 0], sizes = [8, 128], strides = [1, 1]} : vector<8x512xf32> to vector<8x128xf32>
    %80 = arith.negf %79 : vector<8x128xf32>
    %81 = math.exp %80 : vector<8x128xf32>
    %cst_22 = arith.constant 1.000000e+00 : f32
    %82 = vector.broadcast %cst_22 : f32 to vector<8x128xf32>
    %83 = arith.addf %82, %81 : vector<8x128xf32>
    %84 = arith.divf %82, %83 : vector<8x128xf32>
    %85 = vector.extract_strided_slice %78 {offsets = [0, 128], sizes = [8, 128], strides = [1, 1]} : vector<8x512xf32> to vector<8x128xf32>
    %86 = arith.negf %85 : vector<8x128xf32>
    %87 = math.exp %86 : vector<8x128xf32>
    %cst_23 = arith.constant 1.000000e+00 : f32
    %88 = vector.broadcast %cst_23 : f32 to vector<8x128xf32>
    %89 = arith.addf %88, %87 : vector<8x128xf32>
    %90 = arith.divf %88, %89 : vector<8x128xf32>
    %91 = vector.extract_strided_slice %78 {offsets = [0, 256], sizes = [8, 128], strides = [1, 1]} : vector<8x512xf32> to vector<8x128xf32>
    %92 = math.tanh %91 : vector<8x128xf32>
    %93 = vector.extract_strided_slice %78 {offsets = [0, 384], sizes = [8, 128], strides = [1, 1]} : vector<8x512xf32> to vector<8x128xf32>
    %94 = arith.negf %93 : vector<8x128xf32>
    %95 = math.exp %94 : vector<8x128xf32>
    %cst_24 = arith.constant 1.000000e+00 : f32
    %96 = vector.broadcast %cst_24 : f32 to vector<8x128xf32>
    %97 = arith.addf %96, %95 : vector<8x128xf32>
    %98 = arith.divf %96, %97 : vector<8x128xf32>
    %99 = arith.mulf %90, %73 : vector<8x128xf32>
    %100 = arith.mulf %84, %92 : vector<8x128xf32>
    %101 = arith.addf %99, %100 : vector<8x128xf32>
    %102 = math.tanh %101 : vector<8x128xf32>
    %103 = arith.mulf %98, %102 : vector<8x128xf32>
    %104 = arith.cmpi slt, %c2_i32, %5 : i32
    %105 = arith.select %104, %103, %72 : vector<8x128xf32>
    %106 = arith.select %104, %101, %73 : vector<8x128xf32>
    %c3_i32 = arith.constant 3 : i32
    %107 = arith.index_cast %c3_i32 : i32 to index
    %c0_25 = arith.constant 0 : index
    %c0_26 = arith.constant 0 : index
    %108 = vector.load %arg2[%107, %c0_25, %c0_26] : memref<8x8x512xf32, #tpu.memory_space<vmem>>, vector<1x8x512xf32>
    %109 = vector.shape_cast %108 : vector<1x8x512xf32> to vector<8x512xf32>
    %cst_27 = arith.constant dense<0.000000e+00> : vector<8x512xf32>
    %110 = tpu.matmul %105, %3, %cst_27 {dimension_numbers = #tpu.dot_dimension_numbers<[1], [0], [0], [1], [0, 0, 1, 1], [], []>} : vector<8x128xf32>, vector<128x512xf32>, vector<8x512xf32> -> vector<8x512xf32>
    %111 = arith.addf %109, %110 : vector<8x512xf32>
    %112 = vector.extract_strided_slice %111 {offsets = [0, 0], sizes = [8, 128], strides = [1, 1]} : vector<8x512xf32> to vector<8x128xf32>
    %113 = arith.negf %112 : vector<8x128xf32>
    %114 = math.exp %113 : vector<8x128xf32>
    %cst_28 = arith.constant 1.000000e+00 : f32
    %115 = vector.broadcast %cst_28 : f32 to vector<8x128xf32>
    %116 = arith.addf %115, %114 : vector<8x128xf32>
    %117 = arith.divf %115, %116 : vector<8x128xf32>
    %118 = vector.extract_strided_slice %111 {offsets = [0, 128], sizes = [8, 128], strides = [1, 1]} : vector<8x512xf32> to vector<8x128xf32>
    %119 = arith.negf %118 : vector<8x128xf32>
    %120 = math.exp %119 : vector<8x128xf32>
    %cst_29 = arith.constant 1.000000e+00 : f32
    %121 = vector.broadcast %cst_29 : f32 to vector<8x128xf32>
    %122 = arith.addf %121, %120 : vector<8x128xf32>
    %123 = arith.divf %121, %122 : vector<8x128xf32>
    %124 = vector.extract_strided_slice %111 {offsets = [0, 256], sizes = [8, 128], strides = [1, 1]} : vector<8x512xf32> to vector<8x128xf32>
    %125 = math.tanh %124 : vector<8x128xf32>
    %126 = vector.extract_strided_slice %111 {offsets = [0, 384], sizes = [8, 128], strides = [1, 1]} : vector<8x512xf32> to vector<8x128xf32>
    %127 = arith.negf %126 : vector<8x128xf32>
    %128 = math.exp %127 : vector<8x128xf32>
    %cst_30 = arith.constant 1.000000e+00 : f32
    %129 = vector.broadcast %cst_30 : f32 to vector<8x128xf32>
    %130 = arith.addf %129, %128 : vector<8x128xf32>
    %131 = arith.divf %129, %130 : vector<8x128xf32>
    %132 = arith.mulf %123, %106 : vector<8x128xf32>
    %133 = arith.mulf %117, %125 : vector<8x128xf32>
    %134 = arith.addf %132, %133 : vector<8x128xf32>
    %135 = math.tanh %134 : vector<8x128xf32>
    %136 = arith.mulf %131, %135 : vector<8x128xf32>
    %137 = arith.cmpi slt, %c3_i32, %5 : i32
    %138 = arith.select %137, %136, %105 : vector<8x128xf32>
    %139 = arith.select %137, %134, %106 : vector<8x128xf32>
    %c4_i32 = arith.constant 4 : i32
    %140 = arith.index_cast %c4_i32 : i32 to index
    %c0_31 = arith.constant 0 : index
    %c0_32 = arith.constant 0 : index
    %141 = vector.load %arg2[%140, %c0_31, %c0_32] : memref<8x8x512xf32, #tpu.memory_space<vmem>>, vector<1x8x512xf32>
    %142 = vector.shape_cast %141 : vector<1x8x512xf32> to vector<8x512xf32>
    %cst_33 = arith.constant dense<0.000000e+00> : vector<8x512xf32>
    %143 = tpu.matmul %138, %3, %cst_33 {dimension_numbers = #tpu.dot_dimension_numbers<[1], [0], [0], [1], [0, 0, 1, 1], [], []>} : vector<8x128xf32>, vector<128x512xf32>, vector<8x512xf32> -> vector<8x512xf32>
    %144 = arith.addf %142, %143 : vector<8x512xf32>
    %145 = vector.extract_strided_slice %144 {offsets = [0, 0], sizes = [8, 128], strides = [1, 1]} : vector<8x512xf32> to vector<8x128xf32>
    %146 = arith.negf %145 : vector<8x128xf32>
    %147 = math.exp %146 : vector<8x128xf32>
    %cst_34 = arith.constant 1.000000e+00 : f32
    %148 = vector.broadcast %cst_34 : f32 to vector<8x128xf32>
    %149 = arith.addf %148, %147 : vector<8x128xf32>
    %150 = arith.divf %148, %149 : vector<8x128xf32>
    %151 = vector.extract_strided_slice %144 {offsets = [0, 128], sizes = [8, 128], strides = [1, 1]} : vector<8x512xf32> to vector<8x128xf32>
    %152 = arith.negf %151 : vector<8x128xf32>
    %153 = math.exp %152 : vector<8x128xf32>
    %cst_35 = arith.constant 1.000000e+00 : f32
    %154 = vector.broadcast %cst_35 : f32 to vector<8x128xf32>
    %155 = arith.addf %154, %153 : vector<8x128xf32>
    %156 = arith.divf %154, %155 : vector<8x128xf32>
    %157 = vector.extract_strided_slice %144 {offsets = [0, 256], sizes = [8, 128], strides = [1, 1]} : vector<8x512xf32> to vector<8x128xf32>
    %158 = math.tanh %157 : vector<8x128xf32>
    %159 = vector.extract_strided_slice %144 {offsets = [0, 384], sizes = [8, 128], strides = [1, 1]} : vector<8x512xf32> to vector<8x128xf32>
    %160 = arith.negf %159 : vector<8x128xf32>
    %161 = math.exp %160 : vector<8x128xf32>
    %cst_36 = arith.constant 1.000000e+00 : f32
    %162 = vector.broadcast %cst_36 : f32 to vector<8x128xf32>
    %163 = arith.addf %162, %161 : vector<8x128xf32>
    %164 = arith.divf %162, %163 : vector<8x128xf32>
    %165 = arith.mulf %156, %139 : vector<8x128xf32>
    %166 = arith.mulf %150, %158 : vector<8x128xf32>
    %167 = arith.addf %165, %166 : vector<8x128xf32>
    %168 = math.tanh %167 : vector<8x128xf32>
    %169 = arith.mulf %164, %168 : vector<8x128xf32>
    %170 = arith.cmpi slt, %c4_i32, %5 : i32
    %171 = arith.select %170, %169, %138 : vector<8x128xf32>
    %172 = arith.select %170, %167, %139 : vector<8x128xf32>
    %c5_i32 = arith.constant 5 : i32
    %173 = arith.index_cast %c5_i32 : i32 to index
    %c0_37 = arith.constant 0 : index
    %c0_38 = arith.constant 0 : index
    %174 = vector.load %arg2[%173, %c0_37, %c0_38] : memref<8x8x512xf32, #tpu.memory_space<vmem>>, vector<1x8x512xf32>
    %175 = vector.shape_cast %174 : vector<1x8x512xf32> to vector<8x512xf32>
    %cst_39 = arith.constant dense<0.000000e+00> : vector<8x512xf32>
    %176 = tpu.matmul %171, %3, %cst_39 {dimension_numbers = #tpu.dot_dimension_numbers<[1], [0], [0], [1], [0, 0, 1, 1], [], []>} : vector<8x128xf32>, vector<128x512xf32>, vector<8x512xf32> -> vector<8x512xf32>
    %177 = arith.addf %175, %176 : vector<8x512xf32>
    %178 = vector.extract_strided_slice %177 {offsets = [0, 0], sizes = [8, 128], strides = [1, 1]} : vector<8x512xf32> to vector<8x128xf32>
    %179 = arith.negf %178 : vector<8x128xf32>
    %180 = math.exp %179 : vector<8x128xf32>
    %cst_40 = arith.constant 1.000000e+00 : f32
    %181 = vector.broadcast %cst_40 : f32 to vector<8x128xf32>
    %182 = arith.addf %181, %180 : vector<8x128xf32>
    %183 = arith.divf %181, %182 : vector<8x128xf32>
    %184 = vector.extract_strided_slice %177 {offsets = [0, 128], sizes = [8, 128], strides = [1, 1]} : vector<8x512xf32> to vector<8x128xf32>
    %185 = arith.negf %184 : vector<8x128xf32>
    %186 = math.exp %185 : vector<8x128xf32>
    %cst_41 = arith.constant 1.000000e+00 : f32
    %187 = vector.broadcast %cst_41 : f32 to vector<8x128xf32>
    %188 = arith.addf %187, %186 : vector<8x128xf32>
    %189 = arith.divf %187, %188 : vector<8x128xf32>
    %190 = vector.extract_strided_slice %177 {offsets = [0, 256], sizes = [8, 128], strides = [1, 1]} : vector<8x512xf32> to vector<8x128xf32>
    %191 = math.tanh %190 : vector<8x128xf32>
    %192 = vector.extract_strided_slice %177 {offsets = [0, 384], sizes = [8, 128], strides = [1, 1]} : vector<8x512xf32> to vector<8x128xf32>
    %193 = arith.negf %192 : vector<8x128xf32>
    %194 = math.exp %193 : vector<8x128xf32>
    %cst_42 = arith.constant 1.000000e+00 : f32
    %195 = vector.broadcast %cst_42 : f32 to vector<8x128xf32>
    %196 = arith.addf %195, %194 : vector<8x128xf32>
    %197 = arith.divf %195, %196 : vector<8x128xf32>
    %198 = arith.mulf %189, %172 : vector<8x128xf32>
    %199 = arith.mulf %183, %191 : vector<8x128xf32>
    %200 = arith.addf %198, %199 : vector<8x128xf32>
    %201 = math.tanh %200 : vector<8x128xf32>
    %202 = arith.mulf %197, %201 : vector<8x128xf32>
    %203 = arith.cmpi slt, %c5_i32, %5 : i32
    %204 = arith.select %203, %202, %171 : vector<8x128xf32>
    %205 = arith.select %203, %200, %172 : vector<8x128xf32>
    %c6_i32 = arith.constant 6 : i32
    %206 = arith.index_cast %c6_i32 : i32 to index
    %c0_43 = arith.constant 0 : index
    %c0_44 = arith.constant 0 : index
    %207 = vector.load %arg2[%206, %c0_43, %c0_44] : memref<8x8x512xf32, #tpu.memory_space<vmem>>, vector<1x8x512xf32>
    %208 = vector.shape_cast %207 : vector<1x8x512xf32> to vector<8x512xf32>
    %cst_45 = arith.constant dense<0.000000e+00> : vector<8x512xf32>
    %209 = tpu.matmul %204, %3, %cst_45 {dimension_numbers = #tpu.dot_dimension_numbers<[1], [0], [0], [1], [0, 0, 1, 1], [], []>} : vector<8x128xf32>, vector<128x512xf32>, vector<8x512xf32> -> vector<8x512xf32>
    %210 = arith.addf %208, %209 : vector<8x512xf32>
    %211 = vector.extract_strided_slice %210 {offsets = [0, 0], sizes = [8, 128], strides = [1, 1]} : vector<8x512xf32> to vector<8x128xf32>
    %212 = arith.negf %211 : vector<8x128xf32>
    %213 = math.exp %212 : vector<8x128xf32>
    %cst_46 = arith.constant 1.000000e+00 : f32
    %214 = vector.broadcast %cst_46 : f32 to vector<8x128xf32>
    %215 = arith.addf %214, %213 : vector<8x128xf32>
    %216 = arith.divf %214, %215 : vector<8x128xf32>
    %217 = vector.extract_strided_slice %210 {offsets = [0, 128], sizes = [8, 128], strides = [1, 1]} : vector<8x512xf32> to vector<8x128xf32>
    %218 = arith.negf %217 : vector<8x128xf32>
    %219 = math.exp %218 : vector<8x128xf32>
    %cst_47 = arith.constant 1.000000e+00 : f32
    %220 = vector.broadcast %cst_47 : f32 to vector<8x128xf32>
    %221 = arith.addf %220, %219 : vector<8x128xf32>
    %222 = arith.divf %220, %221 : vector<8x128xf32>
    %223 = vector.extract_strided_slice %210 {offsets = [0, 256], sizes = [8, 128], strides = [1, 1]} : vector<8x512xf32> to vector<8x128xf32>
    %224 = math.tanh %223 : vector<8x128xf32>
    %225 = vector.extract_strided_slice %210 {offsets = [0, 384], sizes = [8, 128], strides = [1, 1]} : vector<8x512xf32> to vector<8x128xf32>
    %226 = arith.negf %225 : vector<8x128xf32>
    %227 = math.exp %226 : vector<8x128xf32>
    %cst_48 = arith.constant 1.000000e+00 : f32
    %228 = vector.broadcast %cst_48 : f32 to vector<8x128xf32>
    %229 = arith.addf %228, %227 : vector<8x128xf32>
    %230 = arith.divf %228, %229 : vector<8x128xf32>
    %231 = arith.mulf %222, %205 : vector<8x128xf32>
    %232 = arith.mulf %216, %224 : vector<8x128xf32>
    %233 = arith.addf %231, %232 : vector<8x128xf32>
    %234 = math.tanh %233 : vector<8x128xf32>
    %235 = arith.mulf %230, %234 : vector<8x128xf32>
    %236 = arith.cmpi slt, %c6_i32, %5 : i32
    %237 = arith.select %236, %235, %204 : vector<8x128xf32>
    %238 = arith.select %236, %233, %205 : vector<8x128xf32>
    %c7_i32 = arith.constant 7 : i32
    %239 = arith.index_cast %c7_i32 : i32 to index
    %c0_49 = arith.constant 0 : index
    %c0_50 = arith.constant 0 : index
    %240 = vector.load %arg2[%239, %c0_49, %c0_50] : memref<8x8x512xf32, #tpu.memory_space<vmem>>, vector<1x8x512xf32>
    %241 = vector.shape_cast %240 : vector<1x8x512xf32> to vector<8x512xf32>
    %cst_51 = arith.constant dense<0.000000e+00> : vector<8x512xf32>
    %242 = tpu.matmul %237, %3, %cst_51 {dimension_numbers = #tpu.dot_dimension_numbers<[1], [0], [0], [1], [0, 0, 1, 1], [], []>} : vector<8x128xf32>, vector<128x512xf32>, vector<8x512xf32> -> vector<8x512xf32>
    %243 = arith.addf %241, %242 : vector<8x512xf32>
    %244 = vector.extract_strided_slice %243 {offsets = [0, 0], sizes = [8, 128], strides = [1, 1]} : vector<8x512xf32> to vector<8x128xf32>
    %245 = arith.negf %244 : vector<8x128xf32>
    %246 = math.exp %245 : vector<8x128xf32>
    %cst_52 = arith.constant 1.000000e+00 : f32
    %247 = vector.broadcast %cst_52 : f32 to vector<8x128xf32>
    %248 = arith.addf %247, %246 : vector<8x128xf32>
    %249 = arith.divf %247, %248 : vector<8x128xf32>
    %250 = vector.extract_strided_slice %243 {offsets = [0, 128], sizes = [8, 128], strides = [1, 1]} : vector<8x512xf32> to vector<8x128xf32>
    %251 = arith.negf %250 : vector<8x128xf32>
    %252 = math.exp %251 : vector<8x128xf32>
    %cst_53 = arith.constant 1.000000e+00 : f32
    %253 = vector.broadcast %cst_53 : f32 to vector<8x128xf32>
    %254 = arith.addf %253, %252 : vector<8x128xf32>
    %255 = arith.divf %253, %254 : vector<8x128xf32>
    %256 = vector.extract_strided_slice %243 {offsets = [0, 256], sizes = [8, 128], strides = [1, 1]} : vector<8x512xf32> to vector<8x128xf32>
    %257 = math.tanh %256 : vector<8x128xf32>
    %258 = vector.extract_strided_slice %243 {offsets = [0, 384], sizes = [8, 128], strides = [1, 1]} : vector<8x512xf32> to vector<8x128xf32>
    %259 = arith.negf %258 : vector<8x128xf32>
    %260 = math.exp %259 : vector<8x128xf32>
    %cst_54 = arith.constant 1.000000e+00 : f32
    %261 = vector.broadcast %cst_54 : f32 to vector<8x128xf32>
    %262 = arith.addf %261, %260 : vector<8x128xf32>
    %263 = arith.divf %261, %262 : vector<8x128xf32>
    %264 = arith.mulf %255, %238 : vector<8x128xf32>
    %265 = arith.mulf %249, %257 : vector<8x128xf32>
    %266 = arith.addf %264, %265 : vector<8x128xf32>
    %267 = math.tanh %266 : vector<8x128xf32>
    %268 = arith.mulf %263, %267 : vector<8x128xf32>
    %269 = arith.cmpi slt, %c7_i32, %5 : i32
    %270 = arith.select %269, %268, %237 : vector<8x128xf32>
    %271 = arith.select %269, %266, %238 : vector<8x128xf32>
    %c8_i32_55 = arith.constant 8 : i32
    %c0_56 = arith.constant 0 : index
    %c0_57 = arith.constant 0 : index
    %272 = vector.load %arg5[%c0_56, %c0_57] : memref<8x128xf32, #tpu.memory_space<vmem>>, vector<8x128xf32>
    tpu.vector_store %arg5[%c0_56, %c0_57], %270 {strides = array<i32>} : memref<8x128xf32, #tpu.memory_space<vmem>>, vector<8x128xf32>,
    %c0_58 = arith.constant 0 : index
    %c0_59 = arith.constant 0 : index
    %273 = vector.load %arg6[%c0_58, %c0_59] : memref<8x128xf32, #tpu.memory_space<vmem>>, vector<8x128xf32>
    tpu.vector_store %arg6[%c0_58, %c0_59], %271 {strides = array<i32>} : memref<8x128xf32, #tpu.memory_space<vmem>>, vector<8x128xf32>,
    %c0_i32_60 = arith.constant 0 : i32
    %274 = arith.cmpi eq, %arg1, %c0_i32_60 : i32
    %275 = arith.extui %274 : i1 to i32
    %c0_i32_61 = arith.constant 0 : i32
    %276 = arith.cmpi ne, %275, %c0_i32_61 : i32
    scf.if %276 {
      %c0_62 = arith.constant 0 : index
      %c0_63 = arith.constant 0 : index
      %277 = vector.load %arg4[%c0_62, %c0_63] : memref<8x128xf32, #tpu.memory_space<vmem>>, vector<8x128xf32>
      tpu.vector_store %arg4[%c0_62, %c0_63], %270 {strides = array<i32>} : memref<8x128xf32, #tpu.memory_space<vmem>>, vector<8x128xf32>,
    } else {
    }
    return
  }
  func.func @transform_0(%arg0: i32, %arg1: i32) -> (i32, i32, i32) {
    %c0_i32 = arith.constant 0 : i32
    %c0_i32_0 = arith.constant 0 : i32
    return %arg1, %arg0, %c0_i32 : i32, i32, i32
  }
  func.func @transform_2(%arg0: i32, %arg1: i32) -> (i32, i32) {
    %c0_i32 = arith.constant 0 : i32
    %c0_i32_0 = arith.constant 0 : i32
    return %arg0, %c0_i32 : i32, i32
  }
}

</mosaic_0001>

<llo_original>
// kernel: tpu_custom_call.1
$region0: #{tpu_custom_call.1}
  #allocation0 [shape = 'u32[]', space=smem, size = 0x4, offset = 0x4, fixed_abs, tag = 'smem constant byte address 0x4 - core index']
  #allocation1 [shape = 'u32[144,128]{1,0:T(1,128)}', space=vmem, size = 0x12000, scoped, tag = 'internal scratch']
  #allocation2 [shape = 'f32[8,128]{1,0:T(8,128)}', space=vmem, size = 0x1000, scoped, tag = 'scratch operand']
  #allocation3 [shape = 'f32[8,128]{1,0:T(8,128)}', space=vmem, size = 0x1000, scoped, tag = 'scratch operand']
  #allocation4 [shape = 'f32[128,512]{1,0:T(8,128)}', space=vmem, size = 0x40000, scoped, tag = 'scratch operand']
  #allocation10 [shape = 's32[]', space=sflag, size = 0x4, offset = 0, fixed_abs, tag = 'sflag constant byte address 0x0 - dummy sync flag']
  #allocation11 [shape = 's32[]', space=sflag, size = 0x4, offset = 0, fixed_abs, tag = 'sflag constant byte address 0x0 - dummy sync flag']
  #allocation12 [shape = 'u32[]', space=smem, size = 0x4, offset = 0x44, fixed_abs, tag = 'smem constant byte address 0x44 - assertion arg 0']
  #allocation13 [shape = 'u32[]', space=smem, size = 0x4, offset = 0x48, fixed_abs, tag = 'smem constant byte address 0x48 - assertion arg 1']
  %s0 = inlined_call_operand.hbm [shape: f32[8,8,512], index: 0, kind: input, shape index: {}]
  %s1 = inlined_call_operand.hbm [shape: f32[128,512], index: 1, kind: input, shape index: {}]
  %s2 = inlined_call_operand.hbm [shape: f32[8,128], index: 2, kind: output, shape index: {}]
  %s3 = sld [smem:[#allocation0]]
  $region31: #{tpu_custom_call.1} parent=0
    _
  %s5 = ssub.s32 1, %s3
  %s6 = scalar_select 0, %s5, %s3
  $region1: #{tpu_custom_call.1} parent=0
    #allocation5 [shape = 'u8[131072]{0}', space=vmem, size = 0x20000, scoped, tag = 'input window, operand 0, single buffered']
    #allocation6 [shape = 's32[1]{0}', space=sflag, size = 0x4, scoped, tag = 'scoped memory for tpu_custom_call.1']
    #allocation7 [shape = 's32[1]{0}', space=sflag, size = 0x4, scoped, tag = 'scoped memory for tpu_custom_call.1']
    #allocation8 [shape = 'u8[4096]{0}', space=vmem, size = 0x1000, scoped, tag = 'output window, operand 0, single buffered']
    %7 = vsyncpa [#allocation6], 0
    %8 = vsyncpa [#allocation7], 0
    // Predicated region
    $region2: #{tpu_custom_call.1} parent=1 // pred_check
      _
    $region3: #{tpu_custom_call.1} parent=1 // pred_check_branch
      %10 = sbr.rel (0) target = $region5
    $region4: #{tpu_custom_call.1} parent=1 // pred_region
      %s12 = ssub.s32 4096, 4096
      %13 = vsyncadd [#allocation6], %s12
      %s14 = sshll.u32 [#allocation5], 4
      %s15 = int_to_ptr.vmem [resolvable:$true] %s14
      %20 = dma.hbm_to_vmem [thread:$0]  %s0, 4096, %s15, [#allocation6], 512, 512, 32
    $region5: #{tpu_custom_call.1} parent=1 // pred_fallthru
      _
    // Predicated region
    $region6: #{tpu_custom_call.1} parent=1 // pred_check
      _
    $region7: #{tpu_custom_call.1} parent=1 // pred_check_branch
      %22 = sbr.rel (0) target = $region9
    $region8: #{tpu_custom_call.1} parent=1 // pred_region
      %23 = dma.done [#allocation6], 4096
    $region9: #{tpu_custom_call.1} parent=1 // pred_fallthru
      _
    %p24 = scmp.eq.s32.totalorder 0, 0
    // Predicated region
    $region10: #{tpu_custom_call.1} parent=1 // pred_check
      %p25 = pneg %p24
    $region11: #{tpu_custom_call.1} parent=1 // pred_check_branch
      %27 = sbr.rel (%p25) target = $region13
    $region12: #{tpu_custom_call.1} parent=1 // pred_region
      %28 = vst [vmem:[#allocation2] sm:$0xff] 0.0
      %29 = vst [vmem:[#allocation3] sm:$0xff] 0.0
      $region14: #{tpu_custom_call.1} parent=12
        #allocation9 [shape = 's32[1]{0}', space=sflag, size = 0x4, scoped, tag = 'scoped memory for tpu_custom_call.1']
        // Predicated region
        $region15: #{tpu_custom_call.1} parent=14 // pred_check
          _
        $region16: #{tpu_custom_call.1} parent=14 // pred_check_branch
          %31 = sbr.rel target = $region18
        $region17: #{tpu_custom_call.1} parent=14 // pred_region
          %32 = sst [smem:[#allocation12]] [#allocation11]
          %33 = sst [smem:[#allocation13]] [#allocation10]
        $region18: #{tpu_custom_call.1} parent=14 // pred_fallthru
          _
        %35 = shalt.err (0)
        %s37 = sshll.u32 [#allocation4], 4
        %s38 = int_to_ptr.vmem [resolvable:$true] %s37
        %40 = dma.hbm_to_vmem [thread:$0]  %s1, 8192, %s38, [#allocation9]
        %s41 = smul.u32 8, 16
        %s42 = smul.u32 %s41, 4
        %s43 = sshll.u32 %s42, 4
        %44 = dma.done [#allocation9], %s43
    $region13: #{tpu_custom_call.1} parent=1 // pred_fallthru
      _
    %v45 = vld [vmem:[#allocation4] sm:$0xff]
    %v46 = vld [vmem:[#allocation4 + $0x8] sm:$0xff]
    %v47 = vld [vmem:[#allocation4 + $0x10] sm:$0xff]
    %v48 = vld [vmem:[#allocation4 + $0x18] sm:$0xff]
    %v49 = vld [vmem:[#allocation4 + $0x20] sm:$0xff]
    %v50 = vld [vmem:[#allocation4 + $0x28] sm:$0xff]
    %v51 = vld [vmem:[#allocation4 + $0x30] sm:$0xff]
    %v52 = vld [vmem:[#allocation4 + $0x38] sm:$0xff]
    %v53 = vld [vmem:[#allocation4 + $0x40] sm:$0xff]
    %v54 = vld [vmem:[#allocation4 + $0x48] sm:$0xff]
    %v55 = vld [vmem:[#allocation4 + $0x50] sm:$0xff]
    %v56 = vld [vmem:[#allocation4 + $0x58] sm:$0xff]
    %v57 = vld [vmem:[#allocation4 + $0x60] sm:$0xff]
    %v58 = vld [vmem:[#allocation4 + $0x68] sm:$0xff]
    %v59 = vld [vmem:[#allocation4 + $0x70] sm:$0xff]
    %v60 = vld [vmem:[#allocation4 + $0x78] sm:$0xff]
    %v61 = vld [vmem:[#allocation4 + $0x80] sm:$0xff]
    %v62 = vld [vmem:[#allocation4 + $0x88] sm:$0xff]
    %v63 = vld [vmem:[#allocation4 + $0x90] sm:$0xff]
    %v64 = vld [vmem:[#allocation4 + $0x98] sm:$0xff]
    %v65 = vld [vmem:[#allocation4 + $0xa0] sm:$0xff]
    %v66 = vld [vmem:[#allocation4 + $0xa8] sm:$0xff]
    %v67 = vld [vmem:[#allocation4 + $0xb0] sm:$0xff]
    %v68 = vld [vmem:[#allocation4 + $0xb8] sm:$0xff]
    %v69 = vld [vmem:[#allocation4 + $0xc0] sm:$0xff]
    %v70 = vld [vmem:[#allocation4 + $0xc8] sm:$0xff]
    %v71 = vld [vmem:[#allocation4 + $0xd0] sm:$0xff]
    %v72 = vld [vmem:[#allocation4 + $0xd8] sm:$0xff]
    %v73 = vld [vmem:[#allocation4 + $0xe0] sm:$0xff]
    %v74 = vld [vmem:[#allocation4 + $0xe8] sm:$0xff]
    %v75 = vld [vmem:[#allocation4 + $0xf0] sm:$0xff]
    %v76 = vld [vmem:[#allocation4 + $0xf8] sm:$0xff]
    %v77 = vld [vmem:[#allocation4 + $0x100] sm:$0xff]
    %v78 = vld [vmem:[#allocation4 + $0x108] sm:$0xff]
    %v79 = vld [vmem:[#allocation4 + $0x110] sm:$0xff]
    %v80 = vld [vmem:[#allocation4 + $0x118] sm:$0xff]
    %v81 = vld [vmem:[#allocation4 + $0x120] sm:$0xff]
    %v82 = vld [vmem:[#allocation4 + $0x128] sm:$0xff]
    %v83 = vld [vmem:[#allocation4 + $0x130] sm:$0xff]
    %v84 = vld [vmem:[#allocation4 + $0x138] sm:$0xff]
    %v85 = vld [vmem:[#allocation4 + $0x140] sm:$0xff]
    %v86 = vld [vmem:[#allocation4 + $0x148] sm:$0xff]
    %v87 = vld [vmem:[#allocation4 + $0x150] sm:$0xff]
    %v88 = vld [vmem:[#allocation4 + $0x158] sm:$0xff]
    %v89 = vld [vmem:[#allocation4 + $0x160] sm:$0xff]
    %v90 = vld [vmem:[#allocation4 + $0x168] sm:$0xff]
    %v91 = vld [vmem:[#allocation4 + $0x170] sm:$0xff]
    %v92 = vld [vmem:[#allocation4 + $0x178] sm:$0xff]
    %v93 = vld [vmem:[#allocation4 + $0x180] sm:$0xff]
    %v94 = vld [vmem:[#allocation4 + $0x188] sm:$0xff]
    %v95 = vld [vmem:[#allocation4 + $0x190] sm:$0xff]
    %v96 = vld [vmem:[#allocation4 + $0x198] sm:$0xff]
    %v97 = vld [vmem:[#allocation4 + $0x1a0] sm:$0xff]
    %v98 = vld [vmem:[#allocation4 + $0x1a8] sm:$0xff]
    %v99 = vld [vmem:[#allocation4 + $0x1b0] sm:$0xff]
    %v100 = vld [vmem:[#allocation4 + $0x1b8] sm:$0xff]
    %v101 = vld [vmem:[#allocation4 + $0x1c0] sm:$0xff]
    %v102 = vld [vmem:[#allocation4 + $0x1c8] sm:$0xff]
    %v103 = vld [vmem:[#allocation4 + $0x1d0] sm:$0xff]
    %v104 = vld [vmem:[#allocation4 + $0x1d8] sm:$0xff]
    %v105 = vld [vmem:[#allocation4 + $0x1e0] sm:$0xff]
    %v106 = vld [vmem:[#allocation4 + $0x1e8] sm:$0xff]
    %v107 = vld [vmem:[#allocation4 + $0x1f0] sm:$0xff]
    %v108 = vld [vmem:[#allocation4 + $0x1f8] sm:$0xff]
    %s109 = smul.u32 0, 8
    %s110 = ssub.s32 8, %s109
    %v111 = vld [vmem:[#allocation2] sm:$0xff]
    %v112 = vld [vmem:[#allocation3] sm:$0xff]
    %v113 = vld [vmem:[#allocation5] sm:$0xff]
    %v114 = vld [vmem:[#allocation5 + $0x8] sm:$0xff]
    %v115 = vld [vmem:[#allocation5 + $0x10] sm:$0xff]
    %v116 = vld [vmem:[#allocation5 + $0x18] sm:$0xff]
    %117 = vmatprep.subr.mxu0 %v46
    %118 = vmatpush1.msra.mxu0 %v45
    %119 = vmatprep.subr.mxu0 %v50
    %120 = vmatpush1.msra.mxu0 %v49
    %121 = vmatprep.subr.mxu0 %v54
    %122 = vmatpush1.msra.mxu0 %v53
    %123 = vmatprep.subr.mxu0 %v58
    %124 = vmatpush1.msra.mxu0 %v57
    %125 = vmatprep.subr.mxu0 %v62
    %126 = vmatpush1.msra.mxu0 %v61
    %127 = vmatprep.subr.mxu0 %v66
    %128 = vmatpush1.msra.mxu0 %v65
    %129 = vmatprep.subr.mxu0 %v70
    %130 = vmatpush1.msra.mxu0 %v69
    %131 = vmatprep.subr.mxu0 %v74
    %132 = vmatpush1.msra.mxu0 %v73
    %133 = vmatprep.subr.mxu0 %v78
    %134 = vmatpush1.msra.mxu0 %v77
    %135 = vmatprep.subr.mxu0 %v82
    %136 = vmatpush1.msra.mxu0 %v81
    %137 = vmatprep.subr.mxu0 %v86
    %138 = vmatpush1.msra.mxu0 %v85
    %139 = vmatprep.subr.mxu0 %v90
    %140 = vmatpush1.msra.mxu0 %v89
    %141 = vmatprep.subr.mxu0 %v94
    %142 = vmatpush1.msra.mxu0 %v93
    %143 = vmatprep.subr.mxu0 %v98
    %144 = vmatpush1.msra.mxu0 %v97
    %145 = vmatprep.subr.mxu0 %v102
    %146 = vmatpush1.msra.mxu0 %v101
    %147 = vmatprep.subr.mxu0 %v106
    %148 = vmatpush1.msra.mxu0 %v105
    %149 = vmatprep.subr.mxu0 0.0
    %150 = vmatpush1.msra.mxu0 0.0
    %151 = vmatprep.subr.mxu0 0.0
    %152 = vmatpush1.msra.mxu0 0.0
    %153 = vmatprep.subr.mxu0 0.0
    %154 = vmatpush1.msra.mxu0 0.0
    %155 = vmatprep.subr.mxu0 0.0
    %156 = vmatpush1.msra.mxu0 0.0
    %157 = vmatprep.subr.mxu0 0.0
    %158 = vmatpush1.msra.mxu0 0.0
    %159 = vmatprep.subr.mxu0 0.0
    %160 = vmatpush1.msra.mxu0 0.0
    %161 = vmatprep.subr.mxu0 0.0
    %162 = vmatpush1.msra.mxu0 0.0
    %163 = vmatprep.subr.mxu0 0.0
    %164 = vmatpush1.msra.mxu0 0.0
    %165 = vmatprep.subr.mxu0 0.0
    %166 = vmatpush1.msra.mxu0 0.0
    %167 = vmatprep.subr.mxu0 0.0
    %168 = vmatpush1.msra.mxu0 0.0
    %169 = vmatprep.subr.mxu0 0.0
    %170 = vmatpush1.msra.mxu0 0.0
    %171 = vmatprep.subr.mxu0 0.0
    %172 = vmatpush1.msra.mxu0 0.0
    %173 = vmatprep.subr.mxu0 0.0
    %174 = vmatpush1.msra.mxu0 0.0
    %175 = vmatprep.subr.mxu0 0.0
    %176 = vmatpush1.msra.mxu0 0.0
    %177 = vmatprep.subr.mxu0 0.0
    %178 = vmatpush1.msra.mxu0 0.0
    %179 = vmatprep.subr.mxu0 0.0
    %180 = vmatpush1.msra.mxu0 0.0
    %181 = vmatprep.mubr.f32.mxu0 0.0
    %182 = vmatmul.mubr.f32.gmra.mrb[0].mxu0 %v111
    %v183 = vpop.f32.mrb[0].mxu0
    %v184 = vadd.f32 0.0, %v183
    %v185 = vpop.f32.mrb[0].mxu0
    %v186 = vadd.f32 0.0, %v185
    %187 = vdwg.mxu0
    %188 = vmatprep.subr.mxu0 %v48
    %189 = vmatpush1.msra.mxu0 %v47
    %190 = vmatprep.subr.mxu0 %v52
    %191 = vmatpush1.msra.mxu0 %v51
    %192 = vmatprep.subr.mxu0 %v56
    %193 = vmatpush1.msra.mxu0 %v55
    %194 = vmatprep.subr.mxu0 %v60
    %195 = vmatpush1.msra.mxu0 %v59
    %196 = vmatprep.subr.mxu0 %v64
    %197 = vmatpush1.msra.mxu0 %v63
    %198 = vmatprep.subr.mxu0 %v68
    %199 = vmatpush1.msra.mxu0 %v67
    %200 = vmatprep.subr.mxu0 %v72
    %201 = vmatpush1.msra.mxu0 %v71
    %202 = vmatprep.subr.mxu0 %v76
    %203 = vmatpush1.msra.mxu0 %v75
    %204 = vmatprep.subr.mxu0 %v80
    %205 = vmatpush1.msra.mxu0 %v79
    %206 = vmatprep.subr.mxu0 %v84
    %207 = vmatpush1.msra.mxu0 %v83
    %208 = vmatprep.subr.mxu0 %v88
    %209 = vmatpush1.msra.mxu0 %v87
    %210 = vmatprep.subr.mxu0 %v92
    %211 = vmatpush1.msra.mxu0 %v91
    %212 = vmatprep.subr.mxu0 %v96
    %213 = vmatpush1.msra.mxu0 %v95
    %214 = vmatprep.subr.mxu0 %v100
    %215 = vmatpush1.msra.mxu0 %v99
    %216 = vmatprep.subr.mxu0 %v104
    %217 = vmatpush1.msra.mxu0 %v103
    %218 = vmatprep.subr.mxu0 %v108
    %219 = vmatpush1.msra.mxu0 %v107
    %220 = vmatprep.subr.mxu0 0.0
    %221 = vmatpush1.msra.mxu0 0.0
    %222 = vmatprep.subr.mxu0 0.0
    %223 = vmatpush1.msra.mxu0 0.0
    %224 = vmatprep.subr.mxu0 0.0
    %225 = vmatpush1.msra.mxu0 0.0
    %226 = vmatprep.subr.mxu0 0.0
    %227 = vmatpush1.msra.mxu0 0.0
    %228 = vmatprep.subr.mxu0 0.0
    %229 = vmatpush1.msra.mxu0 0.0
    %230 = vmatprep.subr.mxu0 0.0
    %231 = vmatpush1.msra.mxu0 0.0
    %232 = vmatprep.subr.mxu0 0.0
    %233 = vmatpush1.msra.mxu0 0.0
    %234 = vmatprep.subr.mxu0 0.0
    %235 = vmatpush1.msra.mxu0 0.0
    %236 = vmatprep.subr.mxu0 0.0
    %237 = vmatpush1.msra.mxu0 0.0
    %238 = vmatprep.subr.mxu0 0.0
    %239 = vmatpush1.msra.mxu0 0.0
    %240 = vmatprep.subr.mxu0 0.0
    %241 = vmatpush1.msra.mxu0 0.0
    %242 = vmatprep.subr.mxu0 0.0
    %243 = vmatpush1.msra.mxu0 0.0
    %244 = vmatprep.subr.mxu0 0.0
    %245 = vmatpush1.msra.mxu0 0.0
    %246 = vmatprep.subr.mxu0 0.0
    %247 = vmatpush1.msra.mxu0 0.0
    %248 = vmatprep.subr.mxu0 0.0
    %249 = vmatpush1.msra.mxu0 0.0
    %250 = vmatprep.subr.mxu0 0.0
    %251 = vmatpush1.msra.mxu0 0.0
    %252 = vmatprep.mubr.f32.mxu0 0.0
    %253 = vmatmul.mubr.f32.gmra.mrb[0].mxu0 %v111
    %v254 = vpop.f32.mrb[0].mxu0
    %v255 = vadd.f32 0.0, %v254
    %v256 = vpop.f32.mrb[0].mxu0
    %v257 = vadd.f32 0.0, %v256
    %258 = vdwg.mxu0
    %v259 = vadd.f32 %v113, %v184
    %v260 = vadd.f32 %v114, %v186
    %v261 = vadd.f32 %v115, %v255
    %v262 = vadd.f32 %v116, %v257
    %v263 = vxor.u32 %v259, 2147483648
    %v264 = vmul.f32 %v263, 1.442695
    %v265 = vpow.pop %v264
    %v266 = vadd.f32 %v265, 1.0
    %v267 = vrcp.pop %v266
    %v268 = vmul.f32 1.0, %v267
    %v269 = vxor.u32 %v260, 2147483648
    %v270 = vmul.f32 %v269, 1.442695
    %v271 = vpow.pop %v270
    %v272 = vadd.f32 %v271, 1.0
    %v273 = vrcp.pop %v272
    %v274 = vmul.f32 1.0, %v273
    %v275 = vtanh.pop %v261
    %v276 = vxor.u32 %v262, 2147483648
    %v277 = vmul.f32 %v276, 1.442695
    %v278 = vpow.pop %v277
    %v279 = vadd.f32 %v278, 1.0
    %v280 = vrcp.pop %v279
    %v281 = vmul.f32 1.0, %v280
    %v282 = vmul.f32 %v274, %v112
    %v283 = vmul.f32 %v268, %v275
    %v284 = vadd.f32 %v282, %v283
    %v285 = vtanh.pop %v284
    %v286 = vmul.f32 %v281, %v285
    %p287 = scmp.gt.s32.totalorder %s110, 0
    %s288 = scalar_select %p287, 1, 0
    %v289 = vstv %s288
    %vm290 = vcmp.eq.s32.totalorder %v289, 1
    %v291 = vsel %vm290, %v286, %v111
    %v292 = vsel %vm290, %v284, %v112
    %s293 = scalar_lea.vmem [#allocation5], 32
    %v294 = vld [vmem:[%s293] sm:$0xff]
    %v295 = vld [vmem:[%s293 + $0x8] sm:$0xff]
    %v296 = vld [vmem:[%s293 + $0x10] sm:$0xff]
    %v297 = vld [vmem:[%s293 + $0x18] sm:$0xff]
    %298 = vmatprep.subr.mxu0 %v46
    %299 = vmatpush1.msra.mxu0 %v45
    %300 = vmatprep.subr.mxu0 %v50
    %301 = vmatpush1.msra.mxu0 %v49
    %302 = vmatprep.subr.mxu0 %v54
    %303 = vmatpush1.msra.mxu0 %v53
    %304 = vmatprep.subr.mxu0 %v58
    %305 = vmatpush1.msra.mxu0 %v57
    %306 = vmatprep.subr.mxu0 %v62
    %307 = vmatpush1.msra.mxu0 %v61
    %308 = vmatprep.subr.mxu0 %v66
    %309 = vmatpush1.msra.mxu0 %v65
    %310 = vmatprep.subr.mxu0 %v70
    %311 = vmatpush1.msra.mxu0 %v69
    %312 = vmatprep.subr.mxu0 %v74
    %313 = vmatpush1.msra.mxu0 %v73
    %314 = vmatprep.subr.mxu0 %v78
    %315 = vmatpush1.msra.mxu0 %v77
    %316 = vmatprep.subr.mxu0 %v82
    %317 = vmatpush1.msra.mxu0 %v81
    %318 = vmatprep.subr.mxu0 %v86
    %319 = vmatpush1.msra.mxu0 %v85
    %320 = vmatprep.subr.mxu0 %v90
    %321 = vmatpush1.msra.mxu0 %v89
    %322 = vmatprep.subr.mxu0 %v94
    %323 = vmatpush1.msra.mxu0 %v93
    %324 = vmatprep.subr.mxu0 %v98
    %325 = vmatpush1.msra.mxu0 %v97
    %326 = vmatprep.subr.mxu0 %v102
    %327 = vmatpush1.msra.mxu0 %v101
    %328 = vmatprep.subr.mxu0 %v106
    %329 = vmatpush1.msra.mxu0 %v105
    %330 = vmatprep.subr.mxu0 0.0
    %331 = vmatpush1.msra.mxu0 0.0
    %332 = vmatprep.subr.mxu0 0.0
    %333 = vmatpush1.msra.mxu0 0.0
    %334 = vmatprep.subr.mxu0 0.0
    %335 = vmatpush1.msra.mxu0 0.0
    %336 = vmatprep.subr.mxu0 0.0
    %337 = vmatpush1.msra.mxu0 0.0
    %338 = vmatprep.subr.mxu0 0.0
    %339 = vmatpush1.msra.mxu0 0.0
    %340 = vmatprep.subr.mxu0 0.0
    %341 = vmatpush1.msra.mxu0 0.0
    %342 = vmatprep.subr.mxu0 0.0
    %343 = vmatpush1.msra.mxu0 0.0
    %344 = vmatprep.subr.mxu0 0.0
    %345 = vmatpush1.msra.mxu0 0.0
    %346 = vmatprep.subr.mxu0 0.0
    %347 = vmatpush1.msra.mxu0 0.0
    %348 = vmatprep.subr.mxu0 0.0
    %349 = vmatpush1.msra.mxu0 0.0
    %350 = vmatprep.subr.mxu0 0.0
    %351 = vmatpush1.msra.mxu0 0.0
    %352 = vmatprep.subr.mxu0 0.0
    %353 = vmatpush1.msra.mxu0 0.0
    %354 = vmatprep.subr.mxu0 0.0
    %355 = vmatpush1.msra.mxu0 0.0
    %356 = vmatprep.subr.mxu0 0.0
    %357 = vmatpush1.msra.mxu0 0.0
    %358 = vmatprep.subr.mxu0 0.0
    %359 = vmatpush1.msra.mxu0 0.0
    %360 = vmatprep.subr.mxu0 0.0
    %361 = vmatpush1.msra.mxu0 0.0
    %362 = vmatprep.mubr.f32.mxu0 0.0
    %363 = vmatmul.mubr.f32.gmra.mrb[0].mxu0 %v291
    %v364 = vpop.f32.mrb[0].mxu0
    %v365 = vadd.f32 0.0, %v364
    %v366 = vpop.f32.mrb[0].mxu0
    %v367 = vadd.f32 0.0, %v366
    %368 = vdwg.mxu0
    %369 = vmatprep.subr.mxu0 %v48
    %370 = vmatpush1.msra.mxu0 %v47
    %371 = vmatprep.subr.mxu0 %v52
    %372 = vmatpush1.msra.mxu0 %v51
    %373 = vmatprep.subr.mxu0 %v56
    %374 = vmatpush1.msra.mxu0 %v55
    %375 = vmatprep.subr.mxu0 %v60
    %376 = vmatpush1.msra.mxu0 %v59
    %377 = vmatprep.subr.mxu0 %v64
    %378 = vmatpush1.msra.mxu0 %v63
    %379 = vmatprep.subr.mxu0 %v68
    %380 = vmatpush1.msra.mxu0 %v67
    %381 = vmatprep.subr.mxu0 %v72
    %382 = vmatpush1.msra.mxu0 %v71
    %383 = vmatprep.subr.mxu0 %v76
    %384 = vmatpush1.msra.mxu0 %v75
    %385 = vmatprep.subr.mxu0 %v80
    %386 = vmatpush1.msra.mxu0 %v79
    %387 = vmatprep.subr.mxu0 %v84
    %388 = vmatpush1.msra.mxu0 %v83
    %389 = vmatprep.subr.mxu0 %v88
    %390 = vmatpush1.msra.mxu0 %v87
    %391 = vmatprep.subr.mxu0 %v92
    %392 = vmatpush1.msra.mxu0 %v91
    %393 = vmatprep.subr.mxu0 %v96
    %394 = vmatpush1.msra.mxu0 %v95
    %395 = vmatprep.subr.mxu0 %v100
    %396 = vmatpush1.msra.mxu0 %v99
    %397 = vmatprep.subr.mxu0 %v104
    %398 = vmatpush1.msra.mxu0 %v103
    %399 = vmatprep.subr.mxu0 %v108
    %400 = vmatpush1.msra.mxu0 %v107
    %401 = vmatprep.subr.mxu0 0.0
    %402 = vmatpush1.msra.mxu0 0.0
    %403 = vmatprep.subr.mxu0 0.0
    %404 = vmatpush1.msra.mxu0 0.0
    %405 = vmatprep.subr.mxu0 0.0
    %406 = vmatpush1.msra.mxu0 0.0
    %407 = vmatprep.subr.mxu0 0.0
    %408 = vmatpush1.msra.mxu0 0.0
    %409 = vmatprep.subr.mxu0 0.0
    %410 = vmatpush1.msra.mxu0 0.0
    %411 = vmatprep.subr.mxu0 0.0
    %412 = vmatpush1.msra.mxu0 0.0
    %413 = vmatprep.subr.mxu0 0.0
    %414 = vmatpush1.msra.mxu0 0.0
    %415 = vmatprep.subr.mxu0 0.0
    %416 = vmatpush1.msra.mxu0 0.0
    %417 = vmatprep.subr.mxu0 0.0
    %418 = vmatpush1.msra.mxu0 0.0
    %419 = vmatprep.subr.mxu0 0.0
    %420 = vmatpush1.msra.mxu0 0.0
    %421 = vmatprep.subr.mxu0 0.0
    %422 = vmatpush1.msra.mxu0 0.0
    %423 = vmatprep.subr.mxu0 0.0
    %424 = vmatpush1.msra.mxu0 0.0
    %425 = vmatprep.subr.mxu0 0.0
    %426 = vmatpush1.msra.mxu0 0.0
    %427 = vmatprep.subr.mxu0 0.0
    %428 = vmatpush1.msra.mxu0 0.0
    %429 = vmatprep.subr.mxu0 0.0
    %430 = vmatpush1.msra.mxu0 0.0
    %431 = vmatprep.subr.mxu0 0.0
    %432 = vmatpush1.msra.mxu0 0.0
    %433 = vmatprep.mubr.f32.mxu0 0.0
    %434 = vmatmul.mubr.f32.gmra.mrb[0].mxu0 %v291
    %v435 = vpop.f32.mrb[0].mxu0
    %v436 = vadd.f32 0.0, %v435
    %v437 = vpop.f32.mrb[0].mxu0
    %v438 = vadd.f32 0.0, %v437
    %439 = vdwg.mxu0
    %v440 = vadd.f32 %v294, %v365
    %v441 = vadd.f32 %v295, %v367
    %v442 = vadd.f32 %v296, %v436
    %v443 = vadd.f32 %v297, %v438
    %v444 = vxor.u32 %v440, 2147483648
    %v445 = vmul.f32 %v444, 1.442695
    %v446 = vpow.pop %v445
    %v447 = vadd.f32 %v446, 1.0
    %v448 = vrcp.pop %v447
    %v449 = vmul.f32 1.0, %v448
    %v450 = vxor.u32 %v441, 2147483648
    %v451 = vmul.f32 %v450, 1.442695
    %v452 = vpow.pop %v451
    %v453 = vadd.f32 %v452, 1.0
    %v454 = vrcp.pop %v453
    %v455 = vmul.f32 1.0, %v454
    %v456 = vtanh.pop %v442
    %v457 = vxor.u32 %v443, 2147483648
    %v458 = vmul.f32 %v457, 1.442695
    %v459 = vpow.pop %v458
    %v460 = vadd.f32 %v459, 1.0
    %v461 = vrcp.pop %v460
    %v462 = vmul.f32 1.0, %v461
    %v463 = vmul.f32 %v455, %v292
    %v464 = vmul.f32 %v449, %v456
    %v465 = vadd.f32 %v463, %v464
    %v466 = vtanh.pop %v465
    %v467 = vmul.f32 %v462, %v466
    %p468 = scmp.gt.s32.totalorder %s110, 1
    %s469 = scalar_select %p468, 1, 0
    %v470 = vstv %s469
    %vm471 = vcmp.eq.s32.totalorder %v470, 1
    %v472 = vsel %vm471, %v467, %v291
    %v473 = vsel %vm471, %v465, %v292
    %s474 = scalar_lea.vmem [#allocation5], 64
    %v475 = vld [vmem:[%s474] sm:$0xff]
    %v476 = vld [vmem:[%s474 + $0x8] sm:$0xff]
    %v477 = vld [vmem:[%s474 + $0x10] sm:$0xff]
    %v478 = vld [vmem:[%s474 + $0x18] sm:$0xff]
    %479 = vmatprep.subr.mxu0 %v46
    %480 = vmatpush1.msra.mxu0 %v45
    %481 = vmatprep.subr.mxu0 %v50
    %482 = vmatpush1.msra.mxu0 %v49
    %483 = vmatprep.subr.mxu0 %v54
    %484 = vmatpush1.msra.mxu0 %v53
    %485 = vmatprep.subr.mxu0 %v58
    %486 = vmatpush1.msra.mxu0 %v57
    %487 = vmatprep.subr.mxu0 %v62
    %488 = vmatpush1.msra.mxu0 %v61
    %489 = vmatprep.subr.mxu0 %v66
    %490 = vmatpush1.msra.mxu0 %v65
    %491 = vmatprep.subr.mxu0 %v70
    %492 = vmatpush1.msra.mxu0 %v69
    %493 = vmatprep.subr.mxu0 %v74
    %494 = vmatpush1.msra.mxu0 %v73
    %495 = vmatprep.subr.mxu0 %v78
    %496 = vmatpush1.msra.mxu0 %v77
    %497 = vmatprep.subr.mxu0 %v82
    %498 = vmatpush1.msra.mxu0 %v81
    %499 = vmatprep.subr.mxu0 %v86
    %500 = vmatpush1.msra.mxu0 %v85
    %501 = vmatprep.subr.mxu0 %v90
    %502 = vmatpush1.msra.mxu0 %v89
    %503 = vmatprep.subr.mxu0 %v94
    %504 = vmatpush1.msra.mxu0 %v93
    %505 = vmatprep.subr.mxu0 %v98
    %506 = vmatpush1.msra.mxu0 %v97
    %507 = vmatprep.subr.mxu0 %v102
    %508 = vmatpush1.msra.mxu0 %v101
    %509 = vmatprep.subr.mxu0 %v106
    %510 = vmatpush1.msra.mxu0 %v105
    %511 = vmatprep.subr.mxu0 0.0
    %512 = vmatpush1.msra.mxu0 0.0
    %513 = vmatprep.subr.mxu0 0.0
    %514 = vmatpush1.msra.mxu0 0.0
    %515 = vmatprep.subr.mxu0 0.0
    %516 = vmatpush1.msra.mxu0 0.0
    %517 = vmatprep.subr.mxu0 0.0
    %518 = vmatpush1.msra.mxu0 0.0
    %519 = vmatprep.subr.mxu0 0.0
    %520 = vmatpush1.msra.mxu0 0.0
    %521 = vmatprep.subr.mxu0 0.0
    %522 = vmatpush1.msra.mxu0 0.0
    %523 = vmatprep.subr.mxu0 0.0
    %524 = vmatpush1.msra.mxu0 0.0
    %525 = vmatprep.subr.mxu0 0.0
    %526 = vmatpush1.msra.mxu0 0.0
    %527 = vmatprep.subr.mxu0 0.0
    %528 = vmatpush1.msra.mxu0 0.0
    %529 = vmatprep.subr.mxu0 0.0
    %530 = vmatpush1.msra.mxu0 0.0
    %531 = vmatprep.subr.mxu0 0.0
    %532 = vmatpush1.msra.mxu0 0.0
    %533 = vmatprep.subr.mxu0 0.0
    %534 = vmatpush1.msra.mxu0 0.0
    %535 = vmatprep.subr.mxu0 0.0
    %536 = vmatpush1.msra.mxu0 0.0
    %537 = vmatprep.subr.mxu0 0.0
    %538 = vmatpush1.msra.mxu0 0.0
    %539 = vmatprep.subr.mxu0 0.0
    %540 = vmatpush1.msra.mxu0 0.0
    %541 = vmatprep.subr.mxu0 0.0
    %542 = vmatpush1.msra.mxu0 0.0
    %543 = vmatprep.mubr.f32.mxu0 0.0
    %544 = vmatmul.mubr.f32.gmra.mrb[0].mxu0 %v472
    %v545 = vpop.f32.mrb[0].mxu0
    %v546 = vadd.f32 0.0, %v545
    %v547 = vpop.f32.mrb[0].mxu0
    %v548 = vadd.f32 0.0, %v547
    %549 = vdwg.mxu0
    %550 = vmatprep.subr.mxu0 %v48
    %551 = vmatpush1.msra.mxu0 %v47
    %552 = vmatprep.subr.mxu0 %v52
    %553 = vmatpush1.msra.mxu0 %v51
    %554 = vmatprep.subr.mxu0 %v56
    %555 = vmatpush1.msra.mxu0 %v55
    %556 = vmatprep.subr.mxu0 %v60
    %557 = vmatpush1.msra.mxu0 %v59
    %558 = vmatprep.subr.mxu0 %v64
    %559 = vmatpush1.msra.mxu0 %v63
    %560 = vmatprep.subr.mxu0 %v68
    %561 = vmatpush1.msra.mxu0 %v67
    %562 = vmatprep.subr.mxu0 %v72
    %563 = vmatpush1.msra.mxu0 %v71
    %564 = vmatprep.subr.mxu0 %v76
    %565 = vmatpush1.msra.mxu0 %v75
    %566 = vmatprep.subr.mxu0 %v80
    %567 = vmatpush1.msra.mxu0 %v79
    %568 = vmatprep.subr.mxu0 %v84
    %569 = vmatpush1.msra.mxu0 %v83
    %570 = vmatprep.subr.mxu0 %v88
    %571 = vmatpush1.msra.mxu0 %v87
    %572 = vmatprep.subr.mxu0 %v92
    %573 = vmatpush1.msra.mxu0 %v91
    %574 = vmatprep.subr.mxu0 %v96
    %575 = vmatpush1.msra.mxu0 %v95
    %576 = vmatprep.subr.mxu0 %v100
    %577 = vmatpush1.msra.mxu0 %v99
    %578 = vmatprep.subr.mxu0 %v104
    %579 = vmatpush1.msra.mxu0 %v103
    %580 = vmatprep.subr.mxu0 %v108
    %581 = vmatpush1.msra.mxu0 %v107
    %582 = vmatprep.subr.mxu0 0.0
    %583 = vmatpush1.msra.mxu0 0.0
    %584 = vmatprep.subr.mxu0 0.0
    %585 = vmatpush1.msra.mxu0 0.0
    %586 = vmatprep.subr.mxu0 0.0
    %587 = vmatpush1.msra.mxu0 0.0
    %588 = vmatprep.subr.mxu0 0.0
    %589 = vmatpush1.msra.mxu0 0.0
    %590 = vmatprep.subr.mxu0 0.0
    %591 = vmatpush1.msra.mxu0 0.0
    %592 = vmatprep.subr.mxu0 0.0
    %593 = vmatpush1.msra.mxu0 0.0
    %594 = vmatprep.subr.mxu0 0.0
    %595 = vmatpush1.msra.mxu0 0.0
    %596 = vmatprep.subr.mxu0 0.0
    %597 = vmatpush1.msra.mxu0 0.0
    %598 = vmatprep.subr.mxu0 0.0
    %599 = vmatpush1.msra.mxu0 0.0
    %600 = vmatprep.subr.mxu0 0.0
    %601 = vmatpush1.msra.mxu0 0.0
    %602 = vmatprep.subr.mxu0 0.0
    %603 = vmatpush1.msra.mxu0 0.0
    %604 = vmatprep.subr.mxu0 0.0
    %605 = vmatpush1.msra.mxu0 0.0
    %606 = vmatprep.subr.mxu0 0.0
    %607 = vmatpush1.msra.mxu0 0.0
    %608 = vmatprep.subr.mxu0 0.0
    %609 = vmatpush1.msra.mxu0 0.0
    %610 = vmatprep.subr.mxu0 0.0
    %611 = vmatpush1.msra.mxu0 0.0
    %612 = vmatprep.subr.mxu0 0.0
    %613 = vmatpush1.msra.mxu0 0.0
    %614 = vmatprep.mubr.f32.mxu0 0.0
    %615 = vmatmul.mubr.f32.gmra.mrb[0].mxu0 %v472
    %v616 = vpop.f32.mrb[0].mxu0
    %v617 = vadd.f32 0.0, %v616
    %v618 = vpop.f32.mrb[0].mxu0
    %v619 = vadd.f32 0.0, %v618
    %620 = vdwg.mxu0
    %v621 = vadd.f32 %v475, %v546
    %v622 = vadd.f32 %v476, %v548
    %v623 = vadd.f32 %v477, %v617
    %v624 = vadd.f32 %v478, %v619
    %v625 = vxor.u32 %v621, 2147483648
    %v626 = vmul.f32 %v625, 1.442695
    %v627 = vpow.pop %v626
    %v628 = vadd.f32 %v627, 1.0
    %v629 = vrcp.pop %v628
    %v630 = vmul.f32 1.0, %v629
    %v631 = vxor.u32 %v622, 2147483648
    %v632 = vmul.f32 %v631, 1.442695
    %v633 = vpow.pop %v632
    %v634 = vadd.f32 %v633, 1.0
    %v635 = vrcp.pop %v634
    %v636 = vmul.f32 1.0, %v635
    %v637 = vtanh.pop %v623
    %v638 = vxor.u32 %v624, 2147483648
    %v639 = vmul.f32 %v638, 1.442695
    %v640 = vpow.pop %v639
    %v641 = vadd.f32 %v640, 1.0
    %v642 = vrcp.pop %v641
    %v643 = vmul.f32 1.0, %v642
    %v644 = vmul.f32 %v636, %v473
    %v645 = vmul.f32 %v630, %v637
    %v646 = vadd.f32 %v644, %v645
    %v647 = vtanh.pop %v646
    %v648 = vmul.f32 %v643, %v647
    %p649 = scmp.gt.s32.totalorder %s110, 2
    %s650 = scalar_select %p649, 1, 0
    %v651 = vstv %s650
    %vm652 = vcmp.eq.s32.totalorder %v651, 1
    %v653 = vsel %vm652, %v648, %v472
    %v654 = vsel %vm652, %v646, %v473
    %s655 = scalar_lea.vmem [#allocation5], 96
    %v656 = vld [vmem:[%s655] sm:$0xff]
    %v657 = vld [vmem:[%s655 + $0x8] sm:$0xff]
    %v658 = vld [vmem:[%s655 + $0x10] sm:$0xff]
    %v659 = vld [vmem:[%s655 + $0x18] sm:$0xff]
    %660 = vmatprep.subr.mxu0 %v46
    %661 = vmatpush1.msra.mxu0 %v45
    %662 = vmatprep.subr.mxu0 %v50
    %663 = vmatpush1.msra.mxu0 %v49
    %664 = vmatprep.subr.mxu0 %v54
    %665 = vmatpush1.msra.mxu0 %v53
    %666 = vmatprep.subr.mxu0 %v58
    %667 = vmatpush1.msra.mxu0 %v57
    %668 = vmatprep.subr.mxu0 %v62
    %669 = vmatpush1.msra.mxu0 %v61
    %670 = vmatprep.subr.mxu0 %v66
    %671 = vmatpush1.msra.mxu0 %v65
    %672 = vmatprep.subr.mxu0 %v70
    %673 = vmatpush1.msra.mxu0 %v69
    %674 = vmatprep.subr.mxu0 %v74
    %675 = vmatpush1.msra.mxu0 %v73
    %676 = vmatprep.subr.mxu0 %v78
    %677 = vmatpush1.msra.mxu0 %v77
    %678 = vmatprep.subr.mxu0 %v82
    %679 = vmatpush1.msra.mxu0 %v81
    %680 = vmatprep.subr.mxu0 %v86
    %681 = vmatpush1.msra.mxu0 %v85
    %682 = vmatprep.subr.mxu0 %v90
    %683 = vmatpush1.msra.mxu0 %v89
    %684 = vmatprep.subr.mxu0 %v94
    %685 = vmatpush1.msra.mxu0 %v93
    %686 = vmatprep.subr.mxu0 %v98
    %687 = vmatpush1.msra.mxu0 %v97
    %688 = vmatprep.subr.mxu0 %v102
    %689 = vmatpush1.msra.mxu0 %v101
    %690 = vmatprep.subr.mxu0 %v106
    %691 = vmatpush1.msra.mxu0 %v105
    %692 = vmatprep.subr.mxu0 0.0
    %693 = vmatpush1.msra.mxu0 0.0
    %694 = vmatprep.subr.mxu0 0.0
    %695 = vmatpush1.msra.mxu0 0.0
    %696 = vmatprep.subr.mxu0 0.0
    %697 = vmatpush1.msra.mxu0 0.0
    %698 = vmatprep.subr.mxu0 0.0
    %699 = vmatpush1.msra.mxu0 0.0
    %700 = vmatprep.subr.mxu0 0.0
    %701 = vmatpush1.msra.mxu0 0.0
    %702 = vmatprep.subr.mxu0 0.0
    %703 = vmatpush1.msra.mxu0 0.0
    %704 = vmatprep.subr.mxu0 0.0
    %705 = vmatpush1.msra.mxu0 0.0
    %706 = vmatprep.subr.mxu0 0.0
    %707 = vmatpush1.msra.mxu0 0.0
    %708 = vmatprep.subr.mxu0 0.0
    %709 = vmatpush1.msra.mxu0 0.0
    %710 = vmatprep.subr.mxu0 0.0
    %711 = vmatpush1.msra.mxu0 0.0
    %712 = vmatprep.subr.mxu0 0.0
    %713 = vmatpush1.msra.mxu0 0.0
    %714 = vmatprep.subr.mxu0 0.0
    %715 = vmatpush1.msra.mxu0 0.0
    %716 = vmatprep.subr.mxu0 0.0
    %717 = vmatpush1.msra.mxu0 0.0
    %718 = vmatprep.subr.mxu0 0.0
    %719 = vmatpush1.msra.mxu0 0.0
    %720 = vmatprep.subr.mxu0 0.0
    %721 = vmatpush1.msra.mxu0 0.0
    %722 = vmatprep.subr.mxu0 0.0
    %723 = vmatpush1.msra.mxu0 0.0
    %724 = vmatprep.mubr.f32.mxu0 0.0
    %725 = vmatmul.mubr.f32.gmra.mrb[0].mxu0 %v653
    %v726 = vpop.f32.mrb[0].mxu0
    %v727 = vadd.f32 0.0, %v726
    %v728 = vpop.f32.mrb[0].mxu0
    %v729 = vadd.f32 0.0, %v728
    %730 = vdwg.mxu0
    %731 = vmatprep.subr.mxu0 %v48
    %732 = vmatpush1.msra.mxu0 %v47
    %733 = vmatprep.subr.mxu0 %v52
    %734 = vmatpush1.msra.mxu0 %v51
    %735 = vmatprep.subr.mxu0 %v56
    %736 = vmatpush1.msra.mxu0 %v55
    %737 = vmatprep.subr.mxu0 %v60
    %738 = vmatpush1.msra.mxu0 %v59
    %739 = vmatprep.subr.mxu0 %v64
    %740 = vmatpush1.msra.mxu0 %v63
    %741 = vmatprep.subr.mxu0 %v68
    %742 = vmatpush1.msra.mxu0 %v67
    %743 = vmatprep.subr.mxu0 %v72
    %744 = vmatpush1.msra.mxu0 %v71
    %745 = vmatprep.subr.mxu0 %v76
    %746 = vmatpush1.msra.mxu0 %v75
    %747 = vmatprep.subr.mxu0 %v80
    %748 = vmatpush1.msra.mxu0 %v79
    %749 = vmatprep.subr.mxu0 %v84
    %750 = vmatpush1.msra.mxu0 %v83
    %751 = vmatprep.subr.mxu0 %v88
    %752 = vmatpush1.msra.mxu0 %v87
    %753 = vmatprep.subr.mxu0 %v92
    %754 = vmatpush1.msra.mxu0 %v91
    %755 = vmatprep.subr.mxu0 %v96
    %756 = vmatpush1.msra.mxu0 %v95
    %757 = vmatprep.subr.mxu0 %v100
    %758 = vmatpush1.msra.mxu0 %v99
    %759 = vmatprep.subr.mxu0 %v104
    %760 = vmatpush1.msra.mxu0 %v103
    %761 = vmatprep.subr.mxu0 %v108
    %762 = vmatpush1.msra.mxu0 %v107
    %763 = vmatprep.subr.mxu0 0.0
    %764 = vmatpush1.msra.mxu0 0.0
    %765 = vmatprep.subr.mxu0 0.0
    %766 = vmatpush1.msra.mxu0 0.0
    %767 = vmatprep.subr.mxu0 0.0
    %768 = vmatpush1.msra.mxu0 0.0
    %769 = vmatprep.subr.mxu0 0.0
    %770 = vmatpush1.msra.mxu0 0.0
    %771 = vmatprep.subr.mxu0 0.0
    %772 = vmatpush1.msra.mxu0 0.0
    %773 = vmatprep.subr.mxu0 0.0
    %774 = vmatpush1.msra.mxu0 0.0
    %775 = vmatprep.subr.mxu0 0.0
    %776 = vmatpush1.msra.mxu0 0.0
    %777 = vmatprep.subr.mxu0 0.0
    %778 = vmatpush1.msra.mxu0 0.0
    %779 = vmatprep.subr.mxu0 0.0
    %780 = vmatpush1.msra.mxu0 0.0
    %781 = vmatprep.subr.mxu0 0.0
    %782 = vmatpush1.msra.mxu0 0.0
    %783 = vmatprep.subr.mxu0 0.0
    %784 = vmatpush1.msra.mxu0 0.0
    %785 = vmatprep.subr.mxu0 0.0
    %786 = vmatpush1.msra.mxu0 0.0
    %787 = vmatprep.subr.mxu0 0.0
    %788 = vmatpush1.msra.mxu0 0.0
    %789 = vmatprep.subr.mxu0 0.0
    %790 = vmatpush1.msra.mxu0 0.0
    %791 = vmatprep.subr.mxu0 0.0
    %792 = vmatpush1.msra.mxu0 0.0
    %793 = vmatprep.subr.mxu0 0.0
    %794 = vmatpush1.msra.mxu0 0.0
    %795 = vmatprep.mubr.f32.mxu0 0.0
    %796 = vmatmul.mubr.f32.gmra.mrb[0].mxu0 %v653
    %v797 = vpop.f32.mrb[0].mxu0
    %v798 = vadd.f32 0.0, %v797
    %v799 = vpop.f32.mrb[0].mxu0
    %v800 = vadd.f32 0.0, %v799
    %801 = vdwg.mxu0
    %v802 = vadd.f32 %v656, %v727
    %v803 = vadd.f32 %v657, %v729
    %v804 = vadd.f32 %v658, %v798
    %v805 = vadd.f32 %v659, %v800
    %v806 = vxor.u32 %v802, 2147483648
    %v807 = vmul.f32 %v806, 1.442695
    %v808 = vpow.pop %v807
    %v809 = vadd.f32 %v808, 1.0
    %v810 = vrcp.pop %v809
    %v811 = vmul.f32 1.0, %v810
    %v812 = vxor.u32 %v803, 2147483648
    %v813 = vmul.f32 %v812, 1.442695
    %v814 = vpow.pop %v813
    %v815 = vadd.f32 %v814, 1.0
    %v816 = vrcp.pop %v815
    %v817 = vmul.f32 1.0, %v816
    %v818 = vtanh.pop %v804
    %v819 = vxor.u32 %v805, 2147483648
    %v820 = vmul.f32 %v819, 1.442695
    %v821 = vpow.pop %v820
    %v822 = vadd.f32 %v821, 1.0
    %v823 = vrcp.pop %v822
    %v824 = vmul.f32 1.0, %v823
    %v825 = vmul.f32 %v817, %v654
    %v826 = vmul.f32 %v811, %v818
    %v827 = vadd.f32 %v825, %v826
    %v828 = vtanh.pop %v827
    %v829 = vmul.f32 %v824, %v828
    %p830 = scmp.gt.s32.totalorder %s110, 3
    %s831 = scalar_select %p830, 1, 0
    %v832 = vstv %s831
    %vm833 = vcmp.eq.s32.totalorder %v832, 1
    %v834 = vsel %vm833, %v829, %v653
    %v835 = vsel %vm833, %v827, %v654
    %s836 = scalar_lea.vmem [#allocation5], 128
    %v837 = vld [vmem:[%s836] sm:$0xff]
    %v838 = vld [vmem:[%s836 + $0x8] sm:$0xff]
    %v839 = vld [vmem:[%s836 + $0x10] sm:$0xff]
    %v840 = vld [vmem:[%s836 + $0x18] sm:$0xff]
    %841 = vmatprep.subr.mxu0 %v46
    %842 = vmatpush1.msra.mxu0 %v45
    %843 = vmatprep.subr.mxu0 %v50
    %844 = vmatpush1.msra.mxu0 %v49
    %845 = vmatprep.subr.mxu0 %v54
    %846 = vmatpush1.msra.mxu0 %v53
    %847 = vmatprep.subr.mxu0 %v58
    %848 = vmatpush1.msra.mxu0 %v57
    %849 = vmatprep.subr.mxu0 %v62
    %850 = vmatpush1.msra.mxu0 %v61
    %851 = vmatprep.subr.mxu0 %v66
    %852 = vmatpush1.msra.mxu0 %v65
    %853 = vmatprep.subr.mxu0 %v70
    %854 = vmatpush1.msra.mxu0 %v69
    %855 = vmatprep.subr.mxu0 %v74
    %856 = vmatpush1.msra.mxu0 %v73
    %857 = vmatprep.subr.mxu0 %v78
    %858 = vmatpush1.msra.mxu0 %v77
    %859 = vmatprep.subr.mxu0 %v82
    %860 = vmatpush1.msra.mxu0 %v81
    %861 = vmatprep.subr.mxu0 %v86
    %862 = vmatpush1.msra.mxu0 %v85
    %863 = vmatprep.subr.mxu0 %v90
    %864 = vmatpush1.msra.mxu0 %v89
    %865 = vmatprep.subr.mxu0 %v94
    %866 = vmatpush1.msra.mxu0 %v93
    %867 = vmatprep.subr.mxu0 %v98
    %868 = vmatpush1.msra.mxu0 %v97
    %869 = vmatprep.subr.mxu0 %v102
    %870 = vmatpush1.msra.mxu0 %v101
    %871 = vmatprep.subr.mxu0 %v106
    %872 = vmatpush1.msra.mxu0 %v105
    %873 = vmatprep.subr.mxu0 0.0
    %874 = vmatpush1.msra.mxu0 0.0
    %875 = vmatprep.subr.mxu0 0.0
    %876 = vmatpush1.msra.mxu0 0.0
    %877 = vmatprep.subr.mxu0 0.0
    %878 = vmatpush1.msra.mxu0 0.0
    %879 = vmatprep.subr.mxu0 0.0
    %880 = vmatpush1.msra.mxu0 0.0
    %881 = vmatprep.subr.mxu0 0.0
    %882 = vmatpush1.msra.mxu0 0.0
    %883 = vmatprep.subr.mxu0 0.0
    %884 = vmatpush1.msra.mxu0 0.0
    %885 = vmatprep.subr.mxu0 0.0
    %886 = vmatpush1.msra.mxu0 0.0
    %887 = vmatprep.subr.mxu0 0.0
    %888 = vmatpush1.msra.mxu0 0.0
    %889 = vmatprep.subr.mxu0 0.0
    %890 = vmatpush1.msra.mxu0 0.0
    %891 = vmatprep.subr.mxu0 0.0
    %892 = vmatpush1.msra.mxu0 0.0
    %893 = vmatprep.subr.mxu0 0.0
    %894 = vmatpush1.msra.mxu0 0.0
    %895 = vmatprep.subr.mxu0 0.0
    %896 = vmatpush1.msra.mxu0 0.0
    %897 = vmatprep.subr.mxu0 0.0
    %898 = vmatpush1.msra.mxu0 0.0
    %899 = vmatprep.subr.mxu0 0.0
    %900 = vmatpush1.msra.mxu0 0.0
    %901 = vmatprep.subr.mxu0 0.0
    %902 = vmatpush1.msra.mxu0 0.0
    %903 = vmatprep.subr.mxu0 0.0
    %904 = vmatpush1.msra.mxu0 0.0
    %905 = vmatprep.mubr.f32.mxu0 0.0
    %906 = vmatmul.mubr.f32.gmra.mrb[0].mxu0 %v834
    %v907 = vpop.f32.mrb[0].mxu0
    %v908 = vadd.f32 0.0, %v907
    %v909 = vpop.f32.mrb[0].mxu0
    %v910 = vadd.f32 0.0, %v909
    %911 = vdwg.mxu0
    %912 = vmatprep.subr.mxu0 %v48
    %913 = vmatpush1.msra.mxu0 %v47
    %914 = vmatprep.subr.mxu0 %v52
    %915 = vmatpush1.msra.mxu0 %v51
    %916 = vmatprep.subr.mxu0 %v56
    %917 = vmatpush1.msra.mxu0 %v55
    %918 = vmatprep.subr.mxu0 %v60
    %919 = vmatpush1.msra.mxu0 %v59
    %920 = vmatprep.subr.mxu0 %v64
    %921 = vmatpush1.msra.mxu0 %v63
    %922 = vmatprep.subr.mxu0 %v68
    %923 = vmatpush1.msra.mxu0 %v67
    %924 = vmatprep.subr.mxu0 %v72
    %925 = vmatpush1.msra.mxu0 %v71
    %926 = vmatprep.subr.mxu0 %v76
    %927 = vmatpush1.msra.mxu0 %v75
    %928 = vmatprep.subr.mxu0 %v80
    %929 = vmatpush1.msra.mxu0 %v79
    %930 = vmatprep.subr.mxu0 %v84
    %931 = vmatpush1.msra.mxu0 %v83
    %932 = vmatprep.subr.mxu0 %v88
    %933 = vmatpush1.msra.mxu0 %v87
    %934 = vmatprep.subr.mxu0 %v92
    %935 = vmatpush1.msra.mxu0 %v91
    %936 = vmatprep.subr.mxu0 %v96
    %937 = vmatpush1.msra.mxu0 %v95
    %938 = vmatprep.subr.mxu0 %v100
    %939 = vmatpush1.msra.mxu0 %v99
    %940 = vmatprep.subr.mxu0 %v104
    %941 = vmatpush1.msra.mxu0 %v103
    %942 = vmatprep.subr.mxu0 %v108
    %943 = vmatpush1.msra.mxu0 %v107
    %944 = vmatprep.subr.mxu0 0.0
    %945 = vmatpush1.msra.mxu0 0.0
    %946 = vmatprep.subr.mxu0 0.0
    %947 = vmatpush1.msra.mxu0 0.0
    %948 = vmatprep.subr.mxu0 0.0
    %949 = vmatpush1.msra.mxu0 0.0
    %950 = vmatprep.subr.mxu0 0.0
    %951 = vmatpush1.msra.mxu0 0.0
    %952 = vmatprep.subr.mxu0 0.0
    %953 = vmatpush1.msra.mxu0 0.0
    %954 = vmatprep.subr.mxu0 0.0
    %955 = vmatpush1.msra.mxu0 0.0
    %956 = vmatprep.subr.mxu0 0.0
    %957 = vmatpush1.msra.mxu0 0.0
    %958 = vmatprep.subr.mxu0 0.0
    %959 = vmatpush1.msra.mxu0 0.0
    %960 = vmatprep.subr.mxu0 0.0
    %961 = vmatpush1.msra.mxu0 0.0
    %962 = vmatprep.subr.mxu0 0.0
    %963 = vmatpush1.msra.mxu0 0.0
    %964 = vmatprep.subr.mxu0 0.0
    %965 = vmatpush1.msra.mxu0 0.0
    %966 = vmatprep.subr.mxu0 0.0
    %967 = vmatpush1.msra.mxu0 0.0
    %968 = vmatprep.subr.mxu0 0.0
    %969 = vmatpush1.msra.mxu0 0.0
    %970 = vmatprep.subr.mxu0 0.0
    %971 = vmatpush1.msra.mxu0 0.0
    %972 = vmatprep.subr.mxu0 0.0
    %973 = vmatpush1.msra.mxu0 0.0
    %974 = vmatprep.subr.mxu0 0.0
    %975 = vmatpush1.msra.mxu0 0.0
    %976 = vmatprep.mubr.f32.mxu0 0.0
    %977 = vmatmul.mubr.f32.gmra.mrb[0].mxu0 %v834
    %v978 = vpop.f32.mrb[0].mxu0
    %v979 = vadd.f32 0.0, %v978
    %v980 = vpop.f32.mrb[0].mxu0
    %v981 = vadd.f32 0.0, %v980
    %982 = vdwg.mxu0
    %v983 = vadd.f32 %v837, %v908
    %v984 = vadd.f32 %v838, %v910
    %v985 = vadd.f32 %v839, %v979
    %v986 = vadd.f32 %v840, %v981
    %v987 = vxor.u32 %v983, 2147483648
    %v988 = vmul.f32 %v987, 1.442695
    %v989 = vpow.pop %v988
    %v990 = vadd.f32 %v989, 1.0
    %v991 = vrcp.pop %v990
    %v992 = vmul.f32 1.0, %v991
    %v993 = vxor.u32 %v984, 2147483648
    %v994 = vmul.f32 %v993, 1.442695
    %v995 = vpow.pop %v994
    %v996 = vadd.f32 %v995, 1.0
    %v997 = vrcp.pop %v996
    %v998 = vmul.f32 1.0, %v997
    %v999 = vtanh.pop %v985
    %v1000 = vxor.u32 %v986, 2147483648
    %v1001 = vmul.f32 %v1000, 1.442695
    %v1002 = vpow.pop %v1001
    %v1003 = vadd.f32 %v1002, 1.0
    %v1004 = vrcp.pop %v1003
    %v1005 = vmul.f32 1.0, %v1004
    %v1006 = vmul.f32 %v998, %v835
    %v1007 = vmul.f32 %v992, %v999
    %v1008 = vadd.f32 %v1006, %v1007
    %v1009 = vtanh.pop %v1008
    %v1010 = vmul.f32 %v1005, %v1009
    %p1011 = scmp.gt.s32.totalorder %s110, 4
    %s1012 = scalar_select %p1011, 1, 0
    %v1013 = vstv %s1012
    %vm1014 = vcmp.eq.s32.totalorder %v1013, 1
    %v1015 = vsel %vm1014, %v1010, %v834
    %v1016 = vsel %vm1014, %v1008, %v835
    %s1017 = scalar_lea.vmem [#allocation5], 160
    %v1018 = vld [vmem:[%s1017] sm:$0xff]
    %v1019 = vld [vmem:[%s1017 + $0x8] sm:$0xff]
    %v1020 = vld [vmem:[%s1017 + $0x10] sm:$0xff]
    %v1021 = vld [vmem:[%s1017 + $0x18] sm:$0xff]
    %1022 = vmatprep.subr.mxu0 %v46
    %1023 = vmatpush1.msra.mxu0 %v45
    %1024 = vmatprep.subr.mxu0 %v50
    %1025 = vmatpush1.msra.mxu0 %v49
    %1026 = vmatprep.subr.mxu0 %v54
    %1027 = vmatpush1.msra.mxu0 %v53
    %1028 = vmatprep.subr.mxu0 %v58
    %1029 = vmatpush1.msra.mxu0 %v57
    %1030 = vmatprep.subr.mxu0 %v62
    %1031 = vmatpush1.msra.mxu0 %v61
    %1032 = vmatprep.subr.mxu0 %v66
    %1033 = vmatpush1.msra.mxu0 %v65
    %1034 = vmatprep.subr.mxu0 %v70
    %1035 = vmatpush1.msra.mxu0 %v69
    %1036 = vmatprep.subr.mxu0 %v74
    %1037 = vmatpush1.msra.mxu0 %v73
    %1038 = vmatprep.subr.mxu0 %v78
    %1039 = vmatpush1.msra.mxu0 %v77
    %1040 = vmatprep.subr.mxu0 %v82
    %1041 = vmatpush1.msra.mxu0 %v81
    %1042 = vmatprep.subr.mxu0 %v86
    %1043 = vmatpush1.msra.mxu0 %v85
    %1044 = vmatprep.subr.mxu0 %v90
    %1045 = vmatpush1.msra.mxu0 %v89
    %1046 = vmatprep.subr.mxu0 %v94
    %1047 = vmatpush1.msra.mxu0 %v93
    %1048 = vmatprep.subr.mxu0 %v98
    %1049 = vmatpush1.msra.mxu0 %v97
    %1050 = vmatprep.subr.mxu0 %v102
    %1051 = vmatpush1.msra.mxu0 %v101
    %1052 = vmatprep.subr.mxu0 %v106
    %1053 = vmatpush1.msra.mxu0 %v105
    %1054 = vmatprep.subr.mxu0 0.0
    %1055 = vmatpush1.msra.mxu0 0.0
    %1056 = vmatprep.subr.mxu0 0.0
    %1057 = vmatpush1.msra.mxu0 0.0
    %1058 = vmatprep.subr.mxu0 0.0
    %1059 = vmatpush1.msra.mxu0 0.0
    %1060 = vmatprep.subr.mxu0 0.0
    %1061 = vmatpush1.msra.mxu0 0.0
    %1062 = vmatprep.subr.mxu0 0.0
    %1063 = vmatpush1.msra.mxu0 0.0
    %1064 = vmatprep.subr.mxu0 0.0
    %1065 = vmatpush1.msra.mxu0 0.0
    %1066 = vmatprep.subr.mxu0 0.0
    %1067 = vmatpush1.msra.mxu0 0.0
    %1068 = vmatprep.subr.mxu0 0.0
    %1069 = vmatpush1.msra.mxu0 0.0
    %1070 = vmatprep.subr.mxu0 0.0
    %1071 = vmatpush1.msra.mxu0 0.0
    %1072 = vmatprep.subr.mxu0 0.0
    %1073 = vmatpush1.msra.mxu0 0.0
    %1074 = vmatprep.subr.mxu0 0.0
    %1075 = vmatpush1.msra.mxu0 0.0
    %1076 = vmatprep.subr.mxu0 0.0
    %1077 = vmatpush1.msra.mxu0 0.0
    %1078 = vmatprep.subr.mxu0 0.0
    %1079 = vmatpush1.msra.mxu0 0.0
    %1080 = vmatprep.subr.mxu0 0.0
    %1081 = vmatpush1.msra.mxu0 0.0
    %1082 = vmatprep.subr.mxu0 0.0
    %1083 = vmatpush1.msra.mxu0 0.0
    %1084 = vmatprep.subr.mxu0 0.0
    %1085 = vmatpush1.msra.mxu0 0.0
    %1086 = vmatprep.mubr.f32.mxu0 0.0
    %1087 = vmatmul.mubr.f32.gmra.mrb[0].mxu0 %v1015
    %v1088 = vpop.f32.mrb[0].mxu0
    %v1089 = vadd.f32 0.0, %v1088
    %v1090 = vpop.f32.mrb[0].mxu0
    %v1091 = vadd.f32 0.0, %v1090
    %1092 = vdwg.mxu0
    %1093 = vmatprep.subr.mxu0 %v48
    %1094 = vmatpush1.msra.mxu0 %v47
    %1095 = vmatprep.subr.mxu0 %v52
    %1096 = vmatpush1.msra.mxu0 %v51
    %1097 = vmatprep.subr.mxu0 %v56
    %1098 = vmatpush1.msra.mxu0 %v55
    %1099 = vmatprep.subr.mxu0 %v60
    %1100 = vmatpush1.msra.mxu0 %v59
    %1101 = vmatprep.subr.mxu0 %v64
    %1102 = vmatpush1.msra.mxu0 %v63
    %1103 = vmatprep.subr.mxu0 %v68
    %1104 = vmatpush1.msra.mxu0 %v67
    %1105 = vmatprep.subr.mxu0 %v72
    %1106 = vmatpush1.msra.mxu0 %v71
    %1107 = vmatprep.subr.mxu0 %v76
    %1108 = vmatpush1.msra.mxu0 %v75
    %1109 = vmatprep.subr.mxu0 %v80
    %1110 = vmatpush1.msra.mxu0 %v79
    %1111 = vmatprep.subr.mxu0 %v84
    %1112 = vmatpush1.msra.mxu0 %v83
    %1113 = vmatprep.subr.mxu0 %v88
    %1114 = vmatpush1.msra.mxu0 %v87
    %1115 = vmatprep.subr.mxu0 %v92
    %1116 = vmatpush1.msra.mxu0 %v91
    %1117 = vmatprep.subr.mxu0 %v96
    %1118 = vmatpush1.msra.mxu0 %v95
    %1119 = vmatprep.subr.mxu0 %v100
    %1120 = vmatpush1.msra.mxu0 %v99
    %1121 = vmatprep.subr.mxu0 %v104
    %1122 = vmatpush1.msra.mxu0 %v103
    %1123 = vmatprep.subr.mxu0 %v108
    %1124 = vmatpush1.msra.mxu0 %v107
    %1125 = vmatprep.subr.mxu0 0.0
    %1126 = vmatpush1.msra.mxu0 0.0
    %1127 = vmatprep.subr.mxu0 0.0
    %1128 = vmatpush1.msra.mxu0 0.0
    %1129 = vmatprep.subr.mxu0 0.0
    %1130 = vmatpush1.msra.mxu0 0.0
    %1131 = vmatprep.subr.mxu0 0.0
    %1132 = vmatpush1.msra.mxu0 0.0
    %1133 = vmatprep.subr.mxu0 0.0
    %1134 = vmatpush1.msra.mxu0 0.0
    %1135 = vmatprep.subr.mxu0 0.0
    %1136 = vmatpush1.msra.mxu0 0.0
    %1137 = vmatprep.subr.mxu0 0.0
    %1138 = vmatpush1.msra.mxu0 0.0
    %1139 = vmatprep.subr.mxu0 0.0
    %1140 = vmatpush1.msra.mxu0 0.0
    %1141 = vmatprep.subr.mxu0 0.0
    %1142 = vmatpush1.msra.mxu0 0.0
    %1143 = vmatprep.subr.mxu0 0.0
    %1144 = vmatpush1.msra.mxu0 0.0
    %1145 = vmatprep.subr.mxu0 0.0
    %1146 = vmatpush1.msra.mxu0 0.0
    %1147 = vmatprep.subr.mxu0 0.0
    %1148 = vmatpush1.msra.mxu0 0.0
    %1149 = vmatprep.subr.mxu0 0.0
    %1150 = vmatpush1.msra.mxu0 0.0
    %1151 = vmatprep.subr.mxu0 0.0
    %1152 = vmatpush1.msra.mxu0 0.0
    %1153 = vmatprep.subr.mxu0 0.0
    %1154 = vmatpush1.msra.mxu0 0.0
    %1155 = vmatprep.subr.mxu0 0.0
    %1156 = vmatpush1.msra.mxu0 0.0
    %1157 = vmatprep.mubr.f32.mxu0 0.0
    %1158 = vmatmul.mubr.f32.gmra.mrb[0].mxu0 %v1015
    %v1159 = vpop.f32.mrb[0].mxu0
    %v1160 = vadd.f32 0.0, %v1159
    %v1161 = vpop.f32.mrb[0].mxu0
    %v1162 = vadd.f32 0.0, %v1161
    %1163 = vdwg.mxu0
    %v1164 = vadd.f32 %v1018, %v1089
    %v1165 = vadd.f32 %v1019, %v1091
    %v1166 = vadd.f32 %v1020, %v1160
    %v1167 = vadd.f32 %v1021, %v1162
    %v1168 = vxor.u32 %v1164, 2147483648
    %v1169 = vmul.f32 %v1168, 1.442695
    %v1170 = vpow.pop %v1169
    %v1171 = vadd.f32 %v1170, 1.0
    %v1172 = vrcp.pop %v1171
    %v1173 = vmul.f32 1.0, %v1172
    %v1174 = vxor.u32 %v1165, 2147483648
    %v1175 = vmul.f32 %v1174, 1.442695
    %v1176 = vpow.pop %v1175
    %v1177 = vadd.f32 %v1176, 1.0
    %v1178 = vrcp.pop %v1177
    %v1179 = vmul.f32 1.0, %v1178
    %v1180 = vtanh.pop %v1166
    %v1181 = vxor.u32 %v1167, 2147483648
    %v1182 = vmul.f32 %v1181, 1.442695
    %v1183 = vpow.pop %v1182
    %v1184 = vadd.f32 %v1183, 1.0
    %v1185 = vrcp.pop %v1184
    %v1186 = vmul.f32 1.0, %v1185
    %v1187 = vmul.f32 %v1179, %v1016
    %v1188 = vmul.f32 %v1173, %v1180
    %v1189 = vadd.f32 %v1187, %v1188
    %v1190 = vtanh.pop %v1189
    %v1191 = vmul.f32 %v1186, %v1190
    %p1192 = scmp.gt.s32.totalorder %s110, 5
    %s1193 = scalar_select %p1192, 1, 0
    %v1194 = vstv %s1193
    %vm1195 = vcmp.eq.s32.totalorder %v1194, 1
    %v1196 = vsel %vm1195, %v1191, %v1015
    %v1197 = vsel %vm1195, %v1189, %v1016
    %s1198 = scalar_lea.vmem [#allocation5], 192
    %v1199 = vld [vmem:[%s1198] sm:$0xff]
    %v1200 = vld [vmem:[%s1198 + $0x8] sm:$0xff]
    %v1201 = vld [vmem:[%s1198 + $0x10] sm:$0xff]
    %v1202 = vld [vmem:[%s1198 + $0x18] sm:$0xff]
    %1203 = vmatprep.subr.mxu0 %v46
    %1204 = vmatpush1.msra.mxu0 %v45
    %1205 = vmatprep.subr.mxu0 %v50
    %1206 = vmatpush1.msra.mxu0 %v49
    %1207 = vmatprep.subr.mxu0 %v54
    %1208 = vmatpush1.msra.mxu0 %v53
    %1209 = vmatprep.subr.mxu0 %v58
    %1210 = vmatpush1.msra.mxu0 %v57
    %1211 = vmatprep.subr.mxu0 %v62
    %1212 = vmatpush1.msra.mxu0 %v61
    %1213 = vmatprep.subr.mxu0 %v66
    %1214 = vmatpush1.msra.mxu0 %v65
    %1215 = vmatprep.subr.mxu0 %v70
    %1216 = vmatpush1.msra.mxu0 %v69
    %1217 = vmatprep.subr.mxu0 %v74
    %1218 = vmatpush1.msra.mxu0 %v73
    %1219 = vmatprep.subr.mxu0 %v78
    %1220 = vmatpush1.msra.mxu0 %v77
    %1221 = vmatprep.subr.mxu0 %v82
    %1222 = vmatpush1.msra.mxu0 %v81
    %1223 = vmatprep.subr.mxu0 %v86
    %1224 = vmatpush1.msra.mxu0 %v85
    %1225 = vmatprep.subr.mxu0 %v90
    %1226 = vmatpush1.msra.mxu0 %v89
    %1227 = vmatprep.subr.mxu0 %v94
    %1228 = vmatpush1.msra.mxu0 %v93
    %1229 = vmatprep.subr.mxu0 %v98
    %1230 = vmatpush1.msra.mxu0 %v97
    %1231 = vmatprep.subr.mxu0 %v102
    %1232 = vmatpush1.msra.mxu0 %v101
    %1233 = vmatprep.subr.mxu0 %v106
    %1234 = vmatpush1.msra.mxu0 %v105
    %1235 = vmatprep.subr.mxu0 0.0
    %1236 = vmatpush1.msra.mxu0 0.0
    %1237 = vmatprep.subr.mxu0 0.0
    %1238 = vmatpush1.msra.mxu0 0.0
    %1239 = vmatprep.subr.mxu0 0.0
    %1240 = vmatpush1.msra.mxu0 0.0
    %1241 = vmatprep.subr.mxu0 0.0
    %1242 = vmatpush1.msra.mxu0 0.0
    %1243 = vmatprep.subr.mxu0 0.0
    %1244 = vmatpush1.msra.mxu0 0.0
    %1245 = vmatprep.subr.mxu0 0.0
    %1246 = vmatpush1.msra.mxu0 0.0
    %1247 = vmatprep.subr.mxu0 0.0
    %1248 = vmatpush1.msra.mxu0 0.0
    %1249 = vmatprep.subr.mxu0 0.0
    %1250 = vmatpush1.msra.mxu0 0.0
    %1251 = vmatprep.subr.mxu0 0.0
    %1252 = vmatpush1.msra.mxu0 0.0
    %1253 = vmatprep.subr.mxu0 0.0
    %1254 = vmatpush1.msra.mxu0 0.0
    %1255 = vmatprep.subr.mxu0 0.0
    %1256 = vmatpush1.msra.mxu0 0.0
    %1257 = vmatprep.subr.mxu0 0.0
    %1258 = vmatpush1.msra.mxu0 0.0
    %1259 = vmatprep.subr.mxu0 0.0
    %1260 = vmatpush1.msra.mxu0 0.0
    %1261 = vmatprep.subr.mxu0 0.0
    %1262 = vmatpush1.msra.mxu0 0.0
    %1263 = vmatprep.subr.mxu0 0.0
    %1264 = vmatpush1.msra.mxu0 0.0
    %1265 = vmatprep.subr.mxu0 0.0
    %1266 = vmatpush1.msra.mxu0 0.0
    %1267 = vmatprep.mubr.f32.mxu0 0.0
    %1268 = vmatmul.mubr.f32.gmra.mrb[0].mxu0 %v1196
    %v1269 = vpop.f32.mrb[0].mxu0
    %v1270 = vadd.f32 0.0, %v1269
    %v1271 = vpop.f32.mrb[0].mxu0
    %v1272 = vadd.f32 0.0, %v1271
    %1273 = vdwg.mxu0
    %1274 = vmatprep.subr.mxu0 %v48
    %1275 = vmatpush1.msra.mxu0 %v47
    %1276 = vmatprep.subr.mxu0 %v52
    %1277 = vmatpush1.msra.mxu0 %v51
    %1278 = vmatprep.subr.mxu0 %v56
    %1279 = vmatpush1.msra.mxu0 %v55
    %1280 = vmatprep.subr.mxu0 %v60
    %1281 = vmatpush1.msra.mxu0 %v59
    %1282 = vmatprep.subr.mxu0 %v64
    %1283 = vmatpush1.msra.mxu0 %v63
    %1284 = vmatprep.subr.mxu0 %v68
    %1285 = vmatpush1.msra.mxu0 %v67
    %1286 = vmatprep.subr.mxu0 %v72
    %1287 = vmatpush1.msra.mxu0 %v71
    %1288 = vmatprep.subr.mxu0 %v76
    %1289 = vmatpush1.msra.mxu0 %v75
    %1290 = vmatprep.subr.mxu0 %v80
    %1291 = vmatpush1.msra.mxu0 %v79
    %1292 = vmatprep.subr.mxu0 %v84
    %1293 = vmatpush1.msra.mxu0 %v83
    %1294 = vmatprep.subr.mxu0 %v88
    %1295 = vmatpush1.msra.mxu0 %v87
    %1296 = vmatprep.subr.mxu0 %v92
    %1297 = vmatpush1.msra.mxu0 %v91
    %1298 = vmatprep.subr.mxu0 %v96
    %1299 = vmatpush1.msra.mxu0 %v95
    %1300 = vmatprep.subr.mxu0 %v100
    %1301 = vmatpush1.msra.mxu0 %v99
    %1302 = vmatprep.subr.mxu0 %v104
    %1303 = vmatpush1.msra.mxu0 %v103
    %1304 = vmatprep.subr.mxu0 %v108
    %1305 = vmatpush1.msra.mxu0 %v107
    %1306 = vmatprep.subr.mxu0 0.0
    %1307 = vmatpush1.msra.mxu0 0.0
    %1308 = vmatprep.subr.mxu0 0.0
    %1309 = vmatpush1.msra.mxu0 0.0
    %1310 = vmatprep.subr.mxu0 0.0
    %1311 = vmatpush1.msra.mxu0 0.0
    %1312 = vmatprep.subr.mxu0 0.0
    %1313 = vmatpush1.msra.mxu0 0.0
    %1314 = vmatprep.subr.mxu0 0.0
    %1315 = vmatpush1.msra.mxu0 0.0
    %1316 = vmatprep.subr.mxu0 0.0
    %1317 = vmatpush1.msra.mxu0 0.0
    %1318 = vmatprep.subr.mxu0 0.0
    %1319 = vmatpush1.msra.mxu0 0.0
    %1320 = vmatprep.subr.mxu0 0.0
    %1321 = vmatpush1.msra.mxu0 0.0
    %1322 = vmatprep.subr.mxu0 0.0
    %1323 = vmatpush1.msra.mxu0 0.0
    %1324 = vmatprep.subr.mxu0 0.0
    %1325 = vmatpush1.msra.mxu0 0.0
    %1326 = vmatprep.subr.mxu0 0.0
    %1327 = vmatpush1.msra.mxu0 0.0
    %1328 = vmatprep.subr.mxu0 0.0
    %1329 = vmatpush1.msra.mxu0 0.0
    %1330 = vmatprep.subr.mxu0 0.0
    %1331 = vmatpush1.msra.mxu0 0.0
    %1332 = vmatprep.subr.mxu0 0.0
    %1333 = vmatpush1.msra.mxu0 0.0
    %1334 = vmatprep.subr.mxu0 0.0
    %1335 = vmatpush1.msra.mxu0 0.0
    %1336 = vmatprep.subr.mxu0 0.0
    %1337 = vmatpush1.msra.mxu0 0.0
    %1338 = vmatprep.mubr.f32.mxu0 0.0
    %1339 = vmatmul.mubr.f32.gmra.mrb[0].mxu0 %v1196
    %v1340 = vpop.f32.mrb[0].mxu0
    %v1341 = vadd.f32 0.0, %v1340
    %v1342 = vpop.f32.mrb[0].mxu0
    %v1343 = vadd.f32 0.0, %v1342
    %1344 = vdwg.mxu0
    %v1345 = vadd.f32 %v1199, %v1270
    %v1346 = vadd.f32 %v1200, %v1272
    %v1347 = vadd.f32 %v1201, %v1341
    %v1348 = vadd.f32 %v1202, %v1343
    %v1349 = vxor.u32 %v1345, 2147483648
    %v1350 = vmul.f32 %v1349, 1.442695
    %v1351 = vpow.pop %v1350
    %v1352 = vadd.f32 %v1351, 1.0
    %v1353 = vrcp.pop %v1352
    %v1354 = vmul.f32 1.0, %v1353
    %v1355 = vxor.u32 %v1346, 2147483648
    %v1356 = vmul.f32 %v1355, 1.442695
    %v1357 = vpow.pop %v1356
    %v1358 = vadd.f32 %v1357, 1.0
    %v1359 = vrcp.pop %v1358
    %v1360 = vmul.f32 1.0, %v1359
    %v1361 = vtanh.pop %v1347
    %v1362 = vxor.u32 %v1348, 2147483648
    %v1363 = vmul.f32 %v1362, 1.442695
    %v1364 = vpow.pop %v1363
    %v1365 = vadd.f32 %v1364, 1.0
    %v1366 = vrcp.pop %v1365
    %v1367 = vmul.f32 1.0, %v1366
    %v1368 = vmul.f32 %v1360, %v1197
    %v1369 = vmul.f32 %v1354, %v1361
    %v1370 = vadd.f32 %v1368, %v1369
    %v1371 = vtanh.pop %v1370
    %v1372 = vmul.f32 %v1367, %v1371
    %p1373 = scmp.gt.s32.totalorder %s110, 6
    %s1374 = scalar_select %p1373, 1, 0
    %v1375 = vstv %s1374
    %vm1376 = vcmp.eq.s32.totalorder %v1375, 1
    %v1377 = vsel %vm1376, %v1372, %v1196
    %v1378 = vsel %vm1376, %v1370, %v1197
    %s1379 = scalar_lea.vmem [#allocation5], 224
    %v1380 = vld [vmem:[%s1379] sm:$0xff]
    %v1381 = vld [vmem:[%s1379 + $0x8] sm:$0xff]
    %v1382 = vld [vmem:[%s1379 + $0x10] sm:$0xff]
    %v1383 = vld [vmem:[%s1379 + $0x18] sm:$0xff]
    %1384 = vmatprep.subr.mxu0 %v46
    %1385 = vmatpush1.msra.mxu0 %v45
    %1386 = vmatprep.subr.mxu0 %v50
    %1387 = vmatpush1.msra.mxu0 %v49
    %1388 = vmatprep.subr.mxu0 %v54
    %1389 = vmatpush1.msra.mxu0 %v53
    %1390 = vmatprep.subr.mxu0 %v58
    %1391 = vmatpush1.msra.mxu0 %v57
    %1392 = vmatprep.subr.mxu0 %v62
    %1393 = vmatpush1.msra.mxu0 %v61
    %1394 = vmatprep.subr.mxu0 %v66
    %1395 = vmatpush1.msra.mxu0 %v65
    %1396 = vmatprep.subr.mxu0 %v70
    %1397 = vmatpush1.msra.mxu0 %v69
    %1398 = vmatprep.subr.mxu0 %v74
    %1399 = vmatpush1.msra.mxu0 %v73
    %1400 = vmatprep.subr.mxu0 %v78
    %1401 = vmatpush1.msra.mxu0 %v77
    %1402 = vmatprep.subr.mxu0 %v82
    %1403 = vmatpush1.msra.mxu0 %v81
    %1404 = vmatprep.subr.mxu0 %v86
    %1405 = vmatpush1.msra.mxu0 %v85
    %1406 = vmatprep.subr.mxu0 %v90
    %1407 = vmatpush1.msra.mxu0 %v89
    %1408 = vmatprep.subr.mxu0 %v94
    %1409 = vmatpush1.msra.mxu0 %v93
    %1410 = vmatprep.subr.mxu0 %v98
    %1411 = vmatpush1.msra.mxu0 %v97
    %1412 = vmatprep.subr.mxu0 %v102
    %1413 = vmatpush1.msra.mxu0 %v101
    %1414 = vmatprep.subr.mxu0 %v106
    %1415 = vmatpush1.msra.mxu0 %v105
    %1416 = vmatprep.subr.mxu0 0.0
    %1417 = vmatpush1.msra.mxu0 0.0
    %1418 = vmatprep.subr.mxu0 0.0
    %1419 = vmatpush1.msra.mxu0 0.0
    %1420 = vmatprep.subr.mxu0 0.0
    %1421 = vmatpush1.msra.mxu0 0.0
    %1422 = vmatprep.subr.mxu0 0.0
    %1423 = vmatpush1.msra.mxu0 0.0
    %1424 = vmatprep.subr.mxu0 0.0
    %1425 = vmatpush1.msra.mxu0 0.0
    %1426 = vmatprep.subr.mxu0 0.0
    %1427 = vmatpush1.msra.mxu0 0.0
    %1428 = vmatprep.subr.mxu0 0.0
    %1429 = vmatpush1.msra.mxu0 0.0
    %1430 = vmatprep.subr.mxu0 0.0
    %1431 = vmatpush1.msra.mxu0 0.0
    %1432 = vmatprep.subr.mxu0 0.0
    %1433 = vmatpush1.msra.mxu0 0.0
    %1434 = vmatprep.subr.mxu0 0.0
    %1435 = vmatpush1.msra.mxu0 0.0
    %1436 = vmatprep.subr.mxu0 0.0
    %1437 = vmatpush1.msra.mxu0 0.0
    %1438 = vmatprep.subr.mxu0 0.0
    %1439 = vmatpush1.msra.mxu0 0.0
    %1440 = vmatprep.subr.mxu0 0.0
    %1441 = vmatpush1.msra.mxu0 0.0
    %1442 = vmatprep.subr.mxu0 0.0
    %1443 = vmatpush1.msra.mxu0 0.0
    %1444 = vmatprep.subr.mxu0 0.0
    %1445 = vmatpush1.msra.mxu0 0.0
    %1446 = vmatprep.subr.mxu0 0.0
    %1447 = vmatpush1.msra.mxu0 0.0
    %1448 = vmatprep.mubr.f32.mxu0 0.0
    %1449 = vmatmul.mubr.f32.gmra.mrb[0].mxu0 %v1377
    %v1450 = vpop.f32.mrb[0].mxu0
    %v1451 = vadd.f32 0.0, %v1450
    %v1452 = vpop.f32.mrb[0].mxu0
    %v1453 = vadd.f32 0.0, %v1452
    %1454 = vdwg.mxu0
    %1455 = vmatprep.subr.mxu0 %v48
    %1456 = vmatpush1.msra.mxu0 %v47
    %1457 = vmatprep.subr.mxu0 %v52
    %1458 = vmatpush1.msra.mxu0 %v51
    %1459 = vmatprep.subr.mxu0 %v56
    %1460 = vmatpush1.msra.mxu0 %v55
    %1461 = vmatprep.subr.mxu0 %v60
    %1462 = vmatpush1.msra.mxu0 %v59
    %1463 = vmatprep.subr.mxu0 %v64
    %1464 = vmatpush1.msra.mxu0 %v63
    %1465 = vmatprep.subr.mxu0 %v68
    %1466 = vmatpush1.msra.mxu0 %v67
    %1467 = vmatprep.subr.mxu0 %v72
    %1468 = vmatpush1.msra.mxu0 %v71
    %1469 = vmatprep.subr.mxu0 %v76
    %1470 = vmatpush1.msra.mxu0 %v75
    %1471 = vmatprep.subr.mxu0 %v80
    %1472 = vmatpush1.msra.mxu0 %v79
    %1473 = vmatprep.subr.mxu0 %v84
    %1474 = vmatpush1.msra.mxu0 %v83
    %1475 = vmatprep.subr.mxu0 %v88
    %1476 = vmatpush1.msra.mxu0 %v87
    %1477 = vmatprep.subr.mxu0 %v92
    %1478 = vmatpush1.msra.mxu0 %v91
    %1479 = vmatprep.subr.mxu0 %v96
    %1480 = vmatpush1.msra.mxu0 %v95
    %1481 = vmatprep.subr.mxu0 %v100
    %1482 = vmatpush1.msra.mxu0 %v99
    %1483 = vmatprep.subr.mxu0 %v104
    %1484 = vmatpush1.msra.mxu0 %v103
    %1485 = vmatprep.subr.mxu0 %v108
    %1486 = vmatpush1.msra.mxu0 %v107
    %1487 = vmatprep.subr.mxu0 0.0
    %1488 = vmatpush1.msra.mxu0 0.0
    %1489 = vmatprep.subr.mxu0 0.0
    %1490 = vmatpush1.msra.mxu0 0.0
    %1491 = vmatprep.subr.mxu0 0.0
    %1492 = vmatpush1.msra.mxu0 0.0
    %1493 = vmatprep.subr.mxu0 0.0
    %1494 = vmatpush1.msra.mxu0 0.0
    %1495 = vmatprep.subr.mxu0 0.0
    %1496 = vmatpush1.msra.mxu0 0.0
    %1497 = vmatprep.subr.mxu0 0.0
    %1498 = vmatpush1.msra.mxu0 0.0
    %1499 = vmatprep.subr.mxu0 0.0
    %1500 = vmatpush1.msra.mxu0 0.0
    %1501 = vmatprep.subr.mxu0 0.0
    %1502 = vmatpush1.msra.mxu0 0.0
    %1503 = vmatprep.subr.mxu0 0.0
    %1504 = vmatpush1.msra.mxu0 0.0
    %1505 = vmatprep.subr.mxu0 0.0
    %1506 = vmatpush1.msra.mxu0 0.0
    %1507 = vmatprep.subr.mxu0 0.0
    %1508 = vmatpush1.msra.mxu0 0.0
    %1509 = vmatprep.subr.mxu0 0.0
    %1510 = vmatpush1.msra.mxu0 0.0
    %1511 = vmatprep.subr.mxu0 0.0
    %1512 = vmatpush1.msra.mxu0 0.0
    %1513 = vmatprep.subr.mxu0 0.0
    %1514 = vmatpush1.msra.mxu0 0.0
    %1515 = vmatprep.subr.mxu0 0.0
    %1516 = vmatpush1.msra.mxu0 0.0
    %1517 = vmatprep.subr.mxu0 0.0
    %1518 = vmatpush1.msra.mxu0 0.0
    %1519 = vmatprep.mubr.f32.mxu0 0.0
    %1520 = vmatmul.mubr.f32.gmra.mrb[0].mxu0 %v1377
    %v1521 = vpop.f32.mrb[0].mxu0
    %v1522 = vadd.f32 0.0, %v1521
    %v1523 = vpop.f32.mrb[0].mxu0
    %v1524 = vadd.f32 0.0, %v1523
    %1525 = vdwg.mxu0
    %v1526 = vadd.f32 %v1380, %v1451
    %v1527 = vadd.f32 %v1381, %v1453
    %v1528 = vadd.f32 %v1382, %v1522
    %v1529 = vadd.f32 %v1383, %v1524
    %v1530 = vxor.u32 %v1526, 2147483648
    %v1531 = vmul.f32 %v1530, 1.442695
    %v1532 = vpow.pop %v1531
    %v1533 = vadd.f32 %v1532, 1.0
    %v1534 = vrcp.pop %v1533
    %v1535 = vmul.f32 1.0, %v1534
    %v1536 = vxor.u32 %v1527, 2147483648
    %v1537 = vmul.f32 %v1536, 1.442695
    %v1538 = vpow.pop %v1537
    %v1539 = vadd.f32 %v1538, 1.0
    %v1540 = vrcp.pop %v1539
    %v1541 = vmul.f32 1.0, %v1540
    %v1542 = vtanh.pop %v1528
    %v1543 = vxor.u32 %v1529, 2147483648
    %v1544 = vmul.f32 %v1543, 1.442695
    %v1545 = vpow.pop %v1544
    %v1546 = vadd.f32 %v1545, 1.0
    %v1547 = vrcp.pop %v1546
    %v1548 = vmul.f32 1.0, %v1547
    %v1549 = vmul.f32 %v1541, %v1378
    %v1550 = vmul.f32 %v1535, %v1542
    %v1551 = vadd.f32 %v1549, %v1550
    %v1552 = vtanh.pop %v1551
    %v1553 = vmul.f32 %v1548, %v1552
    %p1554 = scmp.gt.s32.totalorder %s110, 7
    %s1555 = scalar_select %p1554, 1, 0
    %v1556 = vstv %s1555
    %vm1557 = vcmp.eq.s32.totalorder %v1556, 1
    %v1558 = vsel %vm1557, %v1553, %v1377
    %v1559 = vsel %vm1557, %v1551, %v1378
    %1560 = vst [vmem:[#allocation2] sm:$0xff] %v1558
    %1561 = vst [vmem:[#allocation3] sm:$0xff] %v1559
    // Predicated region
    $region19: #{tpu_custom_call.1} parent=1 // pred_check
      %p1562 = pneg %p24
    $region20: #{tpu_custom_call.1} parent=1 // pred_check_branch
      %1564 = sbr.rel (%p1562) target = $region22
    $region21: #{tpu_custom_call.1} parent=1 // pred_region
      %1565 = vst [vmem:[#allocation8] sm:$0xff] %v1558
    $region22: #{tpu_custom_call.1} parent=1 // pred_fallthru
      _
    // Predicated region
    $region23: #{tpu_custom_call.1} parent=1 // pred_check
      _
    $region24: #{tpu_custom_call.1} parent=1 // pred_check_branch
      %1567 = sbr.rel (0) target = $region26
    $region25: #{tpu_custom_call.1} parent=1 // pred_region
      %s1569 = ssub.s32 128, 128
      %1570 = vsyncadd [#allocation7], %s1569
      %s1572 = sshll.u32 [#allocation8], 4
      %s1573 = int_to_ptr.vmem [resolvable:$true] %s1572
      %1575 = dma.vmem_to_hbm [thread:$0]  %s1573, 128, %s2, [#allocation7]
    $region26: #{tpu_custom_call.1} parent=1 // pred_fallthru
      _
    // Predicated region
    $region27: #{tpu_custom_call.1} parent=1 // pred_check
      _
    $region28: #{tpu_custom_call.1} parent=1 // pred_check_branch
      %1577 = sbr.rel (0) target = $region30
    $region29: #{tpu_custom_call.1} parent=1 // pred_region
      %1578 = dma.done [#allocation7], 128
    $region30: #{tpu_custom_call.1} parent=1 // pred_fallthru
      _
    %1579 = vsyncpa [#allocation6], 1
    %1580 = vsyncpa [#allocation7], 1

</llo_original>
